<compile_context>
chip_gen: v7x
topology: tpu7x:2x2x1
jax: 0.10.0
libtpu: 0.0.40
codegen_flags: <defaults>
</compile_context>

<pallas_src>
import math

import jax
import jax.numpy as jnp
from jax.experimental import pallas as pl
from jax.experimental.pallas import tpu as pltpu


_VMEM_LIMIT = 48 * 1024 * 1024  # safe on every generation (v7x has 64 MiB / TC)


def _round_up(x, m):
    return (x + m - 1) // m * m


def _pick_lane_tile(total, cap):
    """Largest power-of-two multiple of 128 that divides `total` and is <= cap."""
    best, c = 128, 128
    while c <= cap:
        if total % c == 0:
            best = c
        c *= 2
    return best


# ---------------------------------------------------------------------------
# Conv matmul (transposed, lane-dense) with BN batch-stats fused in the epilogue
# ---------------------------------------------------------------------------
def _conv_bnstats_kernel(w_ref, c_ref, y_ref, sum_ref, sq_ref):
    # w_ref: (tc, K) bf16, c_ref: (K, tm) bf16 -> f32 MXU accumulator
    acc = jnp.dot(w_ref[...], c_ref[...], preferred_element_type=jnp.float32)
    y_ref[...] = acc.astype(y_ref.dtype)          # bf16 writeback (lane-dense)

    @pl.when(pl.program_id(1) == 0)               # first M block: init accumulators
    def _():
        sum_ref[...] = jnp.zeros_like(sum_ref)
        sq_ref[...] = jnp.zeros_like(sq_ref)

    # per-channel (row) statistics from the f32 accumulator; lane reduce = XLU
    sum_ref[...] += jnp.sum(acc, axis=-1, keepdims=True)
    sq_ref[...] += jnp.sum(acc * acc, axis=-1, keepdims=True)


def conv_matmul_stats(wmat_t, cols_t):
    """wmat_t: [Cout, K] bf16 (built at init); cols_t: [K, M] bf16.
    Returns (y [Cout, Mp] bf16, sum [Cout] f32, sumsq [Cout] f32, Mp)."""
    cout, k = wmat_t.shape
    k2, m = cols_t.shape
    assert k == k2
    mp = _round_up(m, 128)
    if mp != m:
        cols_t = jnp.pad(cols_t, ((0, 0), (0, mp - m)))  # zero cols -> zero acc/stats

    tm = _pick_lane_tile(mp, 512)
    n_j = mp // tm
    # Guarantee >=2 blocks on the parallel axis for v7x when M gives only one tile.
    if n_j == 1 and cout >= 16 and (cout // 2) % 8 == 0:
        tc = cout // 2
    else:
        tc = cout
    n_i = cout // tc

    y, ssum, ssq = pl.pallas_call(
        _conv_bnstats_kernel,
        out_shape=(jax.ShapeDtypeStruct((cout, mp), jnp.bfloat16),
                   jax.ShapeDtypeStruct((cout, 1), jnp.float32),
                   jax.ShapeDtypeStruct((cout, 1), jnp.float32)),
        grid_spec=pltpu.PrefetchScalarGridSpec(
            num_scalar_prefetch=0,
            grid=(n_i, n_j),
            in_specs=[pl.BlockSpec((tc, k), lambda i, j: (i, 0)),   # full-K block
                      pl.BlockSpec((k, tm), lambda i, j: (0, j))],
            out_specs=[pl.BlockSpec((tc, tm), lambda i, j: (i, j)),
                       pl.BlockSpec((tc, 1), lambda i, j: (i, 0)),
                       pl.BlockSpec((tc, 1), lambda i, j: (i, 0))]),
        compiler_params=pltpu.CompilerParams(
            dimension_semantics=("parallel", "arbitrary"),
            vmem_limit_bytes=_VMEM_LIMIT),
        cost_estimate=pl.CostEstimate(
            flops=2 * cout * k * mp,
            transcendentals=0,
            bytes_accessed=(cout * k * 2 * n_j      # weights re-read per M tile
                            + k * mp * 2 * n_i      # cols re-read per Cout tile
                            + cout * mp * 2         # bf16 output
                            + 2 * cout * 4)),       # stats
    )(wmat_t, cols_t)
    return y, ssum[:, 0], ssq[:, 0], mp


def _bn_scale_shift(ssum, ssq, m_true, gamma, beta, eps):
    """Training-mode (biased) BN batch stats -> per-channel scale/shift, shape (C, 1)."""
    mean = ssum / m_true
    # Note: E[x^2]-mean^2 is cancellation-prone for |mean| >> std; sums are accumulated
    # in f32 from the f32 MXU accumulator and the variance is clamped at 0.
    var = jnp.maximum(ssq / m_true - mean * mean, 0.0)
    inv = gamma * jax.lax.rsqrt(var + eps)
    return inv[:, None].astype(jnp.float32), (beta - mean * inv)[:, None].astype(jnp.float32)


# ---------------------------------------------------------------------------
# Fused BN-apply (+ residual / residual-BN) (+ ReLU), lane-dense [C, M] layout
# ---------------------------------------------------------------------------
def _bn_relu_kernel(y_ref, s_ref, b_ref, o_ref):
    v = y_ref[...].astype(jnp.float32) * s_ref[...] + b_ref[...]
    o_ref[...] = jnp.maximum(v, 0.0).astype(o_ref.dtype)


def _bn_add_relu_kernel(y_ref, s_ref, b_ref, r_ref, o_ref):
    v = (y_ref[...].astype(jnp.float32) * s_ref[...] + b_ref[...]
         + r_ref[...].astype(jnp.float32))
    o_ref[...] = jnp.maximum(v, 0.0).astype(o_ref.dtype)


def _bn_addbn_relu_kernel(y_ref, s_ref, b_ref, r_ref, rs_ref, rb_ref, o_ref):
    # bn2(y2) + bn_shortcut(conv_shortcut(x)) followed by ReLU, one HBM pass.
    v = (y_ref[...].astype(jnp.float32) * s_ref[...] + b_ref[...]
         + r_ref[...].astype(jnp.float32) * rs_ref[...] + rb_ref[...])
    o_ref[...] = jnp.maximum(v, 0.0).astype(o_ref.dtype)


def _fused_bn_call(kernel, args, out_dtype):
    """Lane-tiled elementwise pallas_call in [C, M] layout.  Args with a trailing
    dim of 1 are per-channel broadcast vectors; the rest are [C, Mp] tensors."""
    c, mp = next(a.shape for a in args if a.shape[1] != 1)
    tm = _pick_lane_tile(mp, 4096)

    in_specs = []
    for a in args:
        if a.shape[1] == 1:
            in_specs.append(pl.BlockSpec((c, 1), lambda j: (0, 0)))
        else:
            in_specs.append(pl.BlockSpec((c, tm), lambda j: (0, j)))

    return pl.pallas_call(
        kernel,
        out_shape=jax.ShapeDtypeStruct((c, mp), out_dtype),
        grid_spec=pltpu.PrefetchScalarGridSpec(
            num_scalar_prefetch=0,
            grid=(mp // tm,),
            in_specs=in_specs,
            out_specs=pl.BlockSpec((c, tm), lambda j: (0, j))),
        compiler_params=pltpu.CompilerParams(
            dimension_semantics=("parallel",),
            vmem_limit_bytes=_VMEM_LIMIT),
    )(*args)


# ---------------------------------------------------------------------------
# im2col in transposed layout (XLA glue, bf16): [C, N, H, W] -> colsT [kh*kw*C, M]
# ---------------------------------------------------------------------------
def _im2col_t(x_t, kh, kw, stride, pad):
    c, n, h, w = x_t.shape
    ho = (h + 2 * pad - kh) // stride + 1
    wo = (w + 2 * pad - kw) // stride + 1
    xp = x_t if pad == 0 else jnp.pad(x_t, ((0, 0), (0, 0), (pad, pad), (pad, pad)))
    pieces = []
    for i in range(kh):
        for j in range(kw):
            pieces.append(
                xp[:, :, i:i + stride * (ho - 1) + 1:stride,
                          j:j + stride * (wo - 1) + 1:stride])
    cols = pieces[0] if len(pieces) == 1 else jnp.concatenate(pieces, axis=0)
    return cols.reshape(kh * kw * c, n * ho * wo), ho, wo


# ---------------------------------------------------------------------------
# Parameters (match nn.Conv2d / nn.BatchNorm2d structure of BasicBlock)
# ---------------------------------------------------------------------------
def _conv_wmat_t(key, cout, cin, kh, kw):
    fan_out = cout * kh * kw
    std = math.sqrt(2.0 / fan_out)
    w = std * jax.random.normal(key, (cout, cin, kh, kw), jnp.float32)       # OIHW
    # Final GEMM layout [Cout, kh*kw*Cin], bf16, built ONCE at init (no per-call work).
    return jnp.transpose(w, (0, 2, 3, 1)).reshape(cout, kh * kw * cin).astype(jnp.bfloat16)


def _bn_params(c):
    return (jnp.ones((c,), jnp.float32), jnp.zeros((c,), jnp.float32))


def init_basic_block_params(key, in_planes, planes, stride, skippable):
    ks = jax.random.split(key, 4)
    p = {"conv1": _conv_wmat_t(ks[0], planes, in_planes, 3, 3),
         "bn1": _bn_params(planes),
         "conv2": _conv_wmat_t(ks[1], planes, planes, 3, 3),
         "bn2": _bn_params(planes)}
    if skippable:
        p["conv2_skip"] = _conv_wmat_t(ks[2], planes, planes, 3, 3)
        p["bn2_skip"] = _bn_params(planes)
    if stride != 1 or in_planes != planes:
        p["sc_conv"] = _conv_wmat_t(ks[3], planes, in_planes, 1, 1)
        p["sc_bn"] = _bn_params(planes)
    return p


# ---------------------------------------------------------------------------
# BasicBlock forward (training-mode BN, mixed precision bf16/f32)
# ---------------------------------------------------------------------------
def basic_block_forward(params, x_nchw, stride=1, skip=False, eps=1e-5):
    n, cin, h, w = x_nchw.shape
    planes = params["conv1"].shape[0]
    # NCHW -> channel-major [C, N, H, W], bf16 feed for the MXU.
    x_t = jnp.transpose(x_nchw, (1, 0, 2, 3)).astype(jnp.bfloat16)

    # conv1 (+ fused BN stats) -> bn1-apply + relu (bf16 out for the next conv)
    cols1, ho, wo = _im2col_t(x_t, 3, 3, stride, 1)
    m1 = n * ho * wo
    y1, s1, q1, mp1 = conv_matmul_stats(params["conv1"], cols1)
    sc1, sh1 = _bn_scale_shift(s1, q1, m1, *params["bn1"], eps)
    out1 = _fused_bn_call(_bn_relu_kernel, [y1, sc1, sh1], jnp.bfloat16)
    out1_t = out1[:, :m1].reshape(planes, n, ho, wo)    # no-op slice when m1 % 128 == 0

    # conv2 or conv2_skip (+ fused BN stats)
    if skip and ("conv2_skip" in params):
        w2, bn2 = params["conv2_skip"], params["bn2_skip"]
    else:
        w2, bn2 = params["conv2"], params["bn2"]
    cols2, ho2, wo2 = _im2col_t(out1_t, 3, 3, 1, 1)
    m2 = n * ho2 * wo2
    y2, s2, q2, mp2 = conv_matmul_stats(w2, cols2)
    sc2, sh2 = _bn_scale_shift(s2, q2, m2, *bn2, eps)

    # shortcut + bn2-apply + add + relu in a single lane-dense kernel
    if "sc_conv" in params:
        colss, _, _ = _im2col_t(x_t, 1, 1, stride, 0)
        ys, ss, qs, mps = conv_matmul_stats(params["sc_conv"], colss)
        assert mps == mp2
        scs, shs = _bn_scale_shift(ss, qs, m2, *params["sc_bn"], eps)
        out = _fused_bn_call(_bn_addbn_relu_kernel,
                             [y2, sc2, sh2, ys, scs, shs], jnp.float32)
    else:
        res = x_t.reshape(cin, n * h * w)               # identity shortcut
        if res.shape[1] != mp2:
            res = jnp.pad(res, ((0, 0), (0, mp2 - res.shape[1])))
        out = _fused_bn_call(_bn_add_relu_kernel, [y2, sc2, sh2, res], jnp.float32)

    out_t = out[:, :m2].reshape(planes, n, ho2, wo2)
    return jnp.transpose(out_t, (1, 0, 2, 3))           # back to NCHW (f32)


# ---------------------------------------------------------------------------
if __name__ == "__main__":
    key = jax.random.PRNGKey(0)
    pkey1, pkey2, xkey = jax.random.split(key, 3)

    # Block 1: downsampling, skippable (exercises conv-shortcut + conv2_skip paths)
    in_planes, planes, stride = 16, 32, 2
    params1 = init_basic_block_params(pkey1, in_planes, planes, stride, skippable=True)
    # Block 2: identity shortcut, non-skippable
    params2 = init_basic_block_params(pkey2, planes, planes, 1, skippable=False)

    x = jax.random.normal(xkey, (2, in_planes, 16, 16), jnp.float32)

    fwd = jax.jit(basic_block_forward, static_argnames=("stride", "skip"))

    out1 = jax.block_until_ready(fwd(params1, x, stride=stride, skip=False))
    assert out1.shape == (2, planes, 8, 8)
    assert bool(jnp.all(jnp.isfinite(out1)))

    out1_skip = jax.block_until_ready(fwd(params1, x, stride=stride, skip=True))
    assert out1_skip.shape == (2, planes, 8, 8)
    assert bool(jnp.all(jnp.isfinite(out1_skip)))

    out2 = jax.block_until_ready(fwd(params2, out1, stride=1, skip=False))
    assert out2.shape == (2, planes, 8, 8)
    assert bool(jnp.all(jnp.isfinite(out2)))

    print("KERNEL_OK")
</pallas_src>

<mosaic_0001>
module attributes {stable_mosaic.version = 11 : i64} {
  func.func @_conv_bnstats_kernel(%arg0: i32, %arg1: i32, %arg2: memref<16x16xbf16, #tpu.memory_space<vmem>>, %arg3: memref<16x128xbf16, #tpu.memory_space<vmem>>, %arg4: memref<16x128xbf16, #tpu.memory_space<vmem>>, %arg5: memref<16x1xf32, #tpu.memory_space<vmem>>, %arg6: memref<16x1xf32, #tpu.memory_space<vmem>>) attributes {dimension_semantics = [#tpu.dimension_semantics<parallel>, #tpu.dimension_semantics<arbitrary>], iteration_bounds = array<i64: 2, 1>, scalar_prefetch = 0 : i64, scratch_operands = 0 : i64, tpu.core_type = #tpu.core_type<tc>, window_params = [{transform_indices = @transform_0, window_bounds = array<i64: 16, 16>}, {transform_indices = @transform_1, window_bounds = array<i64: 16, 128>}, {transform_indices = @transform_2, window_bounds = array<i64: 16, 128>}, {transform_indices = @transform_3, window_bounds = array<i64: 16, 1>}, {transform_indices = @transform_4, window_bounds = array<i64: 16, 1>}]} {
    %c0 = arith.constant 0 : index
    %c0_0 = arith.constant 0 : index
    %0 = vector.load %arg2[%c0, %c0_0] : memref<16x16xbf16, #tpu.memory_space<vmem>>, vector<16x16xbf16>
    %c0_1 = arith.constant 0 : index
    %c0_2 = arith.constant 0 : index
    %1 = vector.load %arg3[%c0_1, %c0_2] : memref<16x128xbf16, #tpu.memory_space<vmem>>, vector<16x128xbf16>
    %cst = arith.constant dense<0.000000e+00> : vector<16x128xf32>
    %2 = tpu.matmul %0, %1, %cst {dimension_numbers = #tpu.dot_dimension_numbers<[1], [0], [0], [1], [0, 0, 1, 1], [], []>} : vector<16x16xbf16>, vector<16x128xbf16>, vector<16x128xf32> -> vector<16x128xf32>
    %3 = arith.truncf %2 : vector<16x128xf32> to vector<16x128xbf16>
    %c0_3 = arith.constant 0 : index
    %c0_4 = arith.constant 0 : index
    %4 = vector.load %arg4[%c0_3, %c0_4] : memref<16x128xbf16, #tpu.memory_space<vmem>>, vector<16x128xbf16>
    tpu.vector_store %arg4[%c0_3, %c0_4], %3 {strides = array<i32>} : memref<16x128xbf16, #tpu.memory_space<vmem>>, vector<16x128xbf16>,
    %c0_i32 = arith.constant 0 : i32
    %5 = arith.cmpi eq, %arg1, %c0_i32 : i32
    %6 = arith.extui %5 : i1 to i32
    %c0_i32_5 = arith.constant 0 : i32
    %7 = arith.cmpi ne, %6, %c0_i32_5 : i32
    scf.if %7 {
      %cst_16 = arith.constant 0.000000e+00 : f32
      %19 = vector.broadcast %cst_16 : f32 to vector<16x1xf32>
      %c0_17 = arith.constant 0 : index
      %c0_18 = arith.constant 0 : index
      %20 = vector.load %arg5[%c0_17, %c0_18] : memref<16x1xf32, #tpu.memory_space<vmem>>, vector<16x1xf32>
      tpu.vector_store %arg5[%c0_17, %c0_18], %19 {strides = array<i32>} : memref<16x1xf32, #tpu.memory_space<vmem>>, vector<16x1xf32>,
      %cst_19 = arith.constant 0.000000e+00 : f32
      %21 = vector.broadcast %cst_19 : f32 to vector<16x1xf32>
      %c0_20 = arith.constant 0 : index
      %c0_21 = arith.constant 0 : index
      %22 = vector.load %arg6[%c0_20, %c0_21] : memref<16x1xf32, #tpu.memory_space<vmem>>, vector<16x1xf32>
      tpu.vector_store %arg6[%c0_20, %c0_21], %21 {strides = array<i32>} : memref<16x1xf32, #tpu.memory_space<vmem>>, vector<16x1xf32>,
    } else {
    }
    %c0_6 = arith.constant 0 : index
    %c0_7 = arith.constant 0 : index
    %8 = vector.load %arg5[%c0_6, %c0_7] : memref<16x1xf32, #tpu.memory_space<vmem>>, vector<16x1xf32>
    %cst_8 = arith.constant dense<0.000000e+00> : vector<16xf32>
    %9 = vector.multi_reduction <add>, %2, %cst_8 [1] : vector<16x128xf32> to vector<16xf32>
    %10 = vector.shape_cast %9 : vector<16xf32> to vector<16x1xf32>
    %11 = arith.addf %8, %10 : vector<16x1xf32>
    %c0_9 = arith.constant 0 : index
    %c0_10 = arith.constant 0 : index
    %12 = vector.load %arg5[%c0_9, %c0_10] : memref<16x1xf32, #tpu.memory_space<vmem>>, vector<16x1xf32>
    tpu.vector_store %arg5[%c0_9, %c0_10], %11 {strides = array<i32>} : memref<16x1xf32, #tpu.memory_space<vmem>>, vector<16x1xf32>,
    %c0_11 = arith.constant 0 : index
    %c0_12 = arith.constant 0 : index
    %13 = vector.load %arg6[%c0_11, %c0_12] : memref<16x1xf32, #tpu.memory_space<vmem>>, vector<16x1xf32>
    %14 = arith.mulf %2, %2 : vector<16x128xf32>
    %cst_13 = arith.constant dense<0.000000e+00> : vector<16xf32>
    %15 = vector.multi_reduction <add>, %14, %cst_13 [1] : vector<16x128xf32> to vector<16xf32>
    %16 = vector.shape_cast %15 : vector<16xf32> to vector<16x1xf32>
    %17 = arith.addf %13, %16 : vector<16x1xf32>
    %c0_14 = arith.constant 0 : index
    %c0_15 = arith.constant 0 : index
    %18 = vector.load %arg6[%c0_14, %c0_15] : memref<16x1xf32, #tpu.memory_space<vmem>>, vector<16x1xf32>
    tpu.vector_store %arg6[%c0_14, %c0_15], %17 {strides = array<i32>} : memref<16x1xf32, #tpu.memory_space<vmem>>, vector<16x1xf32>,
    return
  }
  func.func @transform_0(%arg0: i32, %arg1: i32) -> (i32, i32) {
    %c0_i32 = arith.constant 0 : i32
    %c0_i32_0 = arith.constant 0 : i32
    return %arg0, %c0_i32 : i32, i32
  }
  func.func @transform_1(%arg0: i32, %arg1: i32) -> (i32, i32) {
    %c0_i32 = arith.constant 0 : i32
    %c0_i32_0 = arith.constant 0 : i32
    return %c0_i32, %arg1 : i32, i32
  }
  func.func @transform_2(%arg0: i32, %arg1: i32) -> (i32, i32) {
    %c0_i32 = arith.constant 0 : i32
    return %arg0, %arg1 : i32, i32
  }
  func.func @transform_3(%arg0: i32, %arg1: i32) -> (i32, i32) {
    %c0_i32 = arith.constant 0 : i32
    %c0_i32_0 = arith.constant 0 : i32
    return %arg0, %c0_i32 : i32, i32
  }
  func.func @transform_4(%arg0: i32, %arg1: i32) -> (i32, i32) {
    %c0_i32 = arith.constant 0 : i32
    %c0_i32_0 = arith.constant 0 : i32
    return %arg0, %c0_i32 : i32, i32
  }
}

module attributes {stable_mosaic.version = 11 : i64} {
  func.func @_conv_bnstats_kernel(%arg0: i32, %arg1: i32, %arg2: memref<16x144xbf16, #tpu.memory_space<vmem>>, %arg3: memref<144x128xbf16, #tpu.memory_space<vmem>>, %arg4: memref<16x128xbf16, #tpu.memory_space<vmem>>, %arg5: memref<16x1xf32, #tpu.memory_space<vmem>>, %arg6: memref<16x1xf32, #tpu.memory_space<vmem>>) attributes {dimension_semantics = [#tpu.dimension_semantics<parallel>, #tpu.dimension_semantics<arbitrary>], iteration_bounds = array<i64: 2, 1>, scalar_prefetch = 0 : i64, scratch_operands = 0 : i64, tpu.core_type = #tpu.core_type<tc>, window_params = [{transform_indices = @transform_0, window_bounds = array<i64: 16, 144>}, {transform_indices = @transform_1, window_bounds = array<i64: 144, 128>}, {transform_indices = @transform_2, window_bounds = array<i64: 16, 128>}, {transform_indices = @transform_3, window_bounds = array<i64: 16, 1>}, {transform_indices = @transform_4, window_bounds = array<i64: 16, 1>}]} {
    %c0 = arith.constant 0 : index
    %c0_0 = arith.constant 0 : index
    %0 = vector.load %arg2[%c0, %c0_0] : memref<16x144xbf16, #tpu.memory_space<vmem>>, vector<16x144xbf16>
    %c0_1 = arith.constant 0 : index
    %c0_2 = arith.constant 0 : index
    %1 = vector.load %arg3[%c0_1, %c0_2] : memref<144x128xbf16, #tpu.memory_space<vmem>>, vector<144x128xbf16>
    %cst = arith.constant dense<0.000000e+00> : vector<16x128xf32>
    %2 = tpu.matmul %0, %1, %cst {dimension_numbers = #tpu.dot_dimension_numbers<[1], [0], [0], [1], [0, 0, 1, 1], [], []>} : vector<16x144xbf16>, vector<144x128xbf16>, vector<16x128xf32> -> vector<16x128xf32>
    %3 = arith.truncf %2 : vector<16x128xf32> to vector<16x128xbf16>
    %c0_3 = arith.constant 0 : index
    %c0_4 = arith.constant 0 : index
    %4 = vector.load %arg4[%c0_3, %c0_4] : memref<16x128xbf16, #tpu.memory_space<vmem>>, vector<16x128xbf16>
    tpu.vector_store %arg4[%c0_3, %c0_4], %3 {strides = array<i32>} : memref<16x128xbf16, #tpu.memory_space<vmem>>, vector<16x128xbf16>,
    %c0_i32 = arith.constant 0 : i32
    %5 = arith.cmpi eq, %arg1, %c0_i32 : i32
    %6 = arith.extui %5 : i1 to i32
    %c0_i32_5 = arith.constant 0 : i32
    %7 = arith.cmpi ne, %6, %c0_i32_5 : i32
    scf.if %7 {
      %cst_16 = arith.constant 0.000000e+00 : f32
      %19 = vector.broadcast %cst_16 : f32 to vector<16x1xf32>
      %c0_17 = arith.constant 0 : index
      %c0_18 = arith.constant 0 : index
      %20 = vector.load %arg5[%c0_17, %c0_18] : memref<16x1xf32, #tpu.memory_space<vmem>>, vector<16x1xf32>
      tpu.vector_store %arg5[%c0_17, %c0_18], %19 {strides = array<i32>} : memref<16x1xf32, #tpu.memory_space<vmem>>, vector<16x1xf32>,
      %cst_19 = arith.constant 0.000000e+00 : f32
      %21 = vector.broadcast %cst_19 : f32 to vector<16x1xf32>
      %c0_20 = arith.constant 0 : index
      %c0_21 = arith.constant 0 : index
      %22 = vector.load %arg6[%c0_20, %c0_21] : memref<16x1xf32, #tpu.memory_space<vmem>>, vector<16x1xf32>
      tpu.vector_store %arg6[%c0_20, %c0_21], %21 {strides = array<i32>} : memref<16x1xf32, #tpu.memory_space<vmem>>, vector<16x1xf32>,
    } else {
    }
    %c0_6 = arith.constant 0 : index
    %c0_7 = arith.constant 0 : index
    %8 = vector.load %arg5[%c0_6, %c0_7] : memref<16x1xf32, #tpu.memory_space<vmem>>, vector<16x1xf32>
    %cst_8 = arith.constant dense<0.000000e+00> : vector<16xf32>
    %9 = vector.multi_reduction <add>, %2, %cst_8 [1] : vector<16x128xf32> to vector<16xf32>
    %10 = vector.shape_cast %9 : vector<16xf32> to vector<16x1xf32>
    %11 = arith.addf %8, %10 : vector<16x1xf32>
    %c0_9 = arith.constant 0 : index
    %c0_10 = arith.constant 0 : index
    %12 = vector.load %arg5[%c0_9, %c0_10] : memref<16x1xf32, #tpu.memory_space<vmem>>, vector<16x1xf32>
    tpu.vector_store %arg5[%c0_9, %c0_10], %11 {strides = array<i32>} : memref<16x1xf32, #tpu.memory_space<vmem>>, vector<16x1xf32>,
    %c0_11 = arith.constant 0 : index
    %c0_12 = arith.constant 0 : index
    %13 = vector.load %arg6[%c0_11, %c0_12] : memref<16x1xf32, #tpu.memory_space<vmem>>, vector<16x1xf32>
    %14 = arith.mulf %2, %2 : vector<16x128xf32>
    %cst_13 = arith.constant dense<0.000000e+00> : vector<16xf32>
    %15 = vector.multi_reduction <add>, %14, %cst_13 [1] : vector<16x128xf32> to vector<16xf32>
    %16 = vector.shape_cast %15 : vector<16xf32> to vector<16x1xf32>
    %17 = arith.addf %13, %16 : vector<16x1xf32>
    %c0_14 = arith.constant 0 : index
    %c0_15 = arith.constant 0 : index
    %18 = vector.load %arg6[%c0_14, %c0_15] : memref<16x1xf32, #tpu.memory_space<vmem>>, vector<16x1xf32>
    tpu.vector_store %arg6[%c0_14, %c0_15], %17 {strides = array<i32>} : memref<16x1xf32, #tpu.memory_space<vmem>>, vector<16x1xf32>,
    return
  }
  func.func @transform_0(%arg0: i32, %arg1: i32) -> (i32, i32) {
    %c0_i32 = arith.constant 0 : i32
    %c0_i32_0 = arith.constant 0 : i32
    return %arg0, %c0_i32 : i32, i32
  }
  func.func @transform_1(%arg0: i32, %arg1: i32) -> (i32, i32) {
    %c0_i32 = arith.constant 0 : i32
    %c0_i32_0 = arith.constant 0 : i32
    return %c0_i32, %arg1 : i32, i32
  }
  func.func @transform_2(%arg0: i32, %arg1: i32) -> (i32, i32) {
    %c0_i32 = arith.constant 0 : i32
    return %arg0, %arg1 : i32, i32
  }
  func.func @transform_3(%arg0: i32, %arg1: i32) -> (i32, i32) {
    %c0_i32 = arith.constant 0 : i32
    %c0_i32_0 = arith.constant 0 : i32
    return %arg0, %c0_i32 : i32, i32
  }
  func.func @transform_4(%arg0: i32, %arg1: i32) -> (i32, i32) {
    %c0_i32 = arith.constant 0 : i32
    %c0_i32_0 = arith.constant 0 : i32
    return %arg0, %c0_i32 : i32, i32
  }
}

module attributes {stable_mosaic.version = 11 : i64} {
  func.func @_bn_relu_kernel(%arg0: i32, %arg1: memref<32x128xbf16, #tpu.memory_space<vmem>>, %arg2: memref<32x1xf32, #tpu.memory_space<vmem>>, %arg3: memref<32x1xf32, #tpu.memory_space<vmem>>, %arg4: memref<32x128xbf16, #tpu.memory_space<vmem>>) attributes {dimension_semantics = [#tpu.dimension_semantics<parallel>], iteration_bounds = array<i64: 1>, scalar_prefetch = 0 : i64, scratch_operands = 0 : i64, tpu.core_type = #tpu.core_type<tc>, window_params = [{transform_indices = @transform_0, window_bounds = array<i64: 32, 128>}, {pipeline_mode = #tpu.pipeline_mode<synchronous>, transform_indices = @transform_1, window_bounds = array<i64: 32, 1>}, {pipeline_mode = #tpu.pipeline_mode<synchronous>, transform_indices = @transform_2, window_bounds = array<i64: 32, 1>}, {transform_indices = @transform_3, window_bounds = array<i64: 32, 128>}]} {
    %c0 = arith.constant 0 : index
    %c0_0 = arith.constant 0 : index
    %0 = vector.load %arg1[%c0, %c0_0] : memref<32x128xbf16, #tpu.memory_space<vmem>>, vector<32x128xbf16>
    %1 = arith.extf %0 : vector<32x128xbf16> to vector<32x128xf32>
    %c0_1 = arith.constant 0 : index
    %c0_2 = arith.constant 0 : index
    %2 = vector.load %arg2[%c0_1, %c0_2] : memref<32x1xf32, #tpu.memory_space<vmem>>, vector<32x1xf32>
    %3 = vector.broadcast %2 : vector<32x1xf32> to vector<32x128xf32>
    %4 = arith.mulf %1, %3 : vector<32x128xf32>
    %c0_3 = arith.constant 0 : index
    %c0_4 = arith.constant 0 : index
    %5 = vector.load %arg3[%c0_3, %c0_4] : memref<32x1xf32, #tpu.memory_space<vmem>>, vector<32x1xf32>
    %6 = vector.broadcast %5 : vector<32x1xf32> to vector<32x128xf32>
    %7 = arith.addf %4, %6 : vector<32x128xf32>
    %cst = arith.constant 0.000000e+00 : f32
    %8 = vector.broadcast %cst : f32 to vector<32x128xf32>
    %9 = arith.maximumf %7, %8 : vector<32x128xf32>
    %10 = arith.truncf %9 : vector<32x128xf32> to vector<32x128xbf16>
    %c0_5 = arith.constant 0 : index
    %c0_6 = arith.constant 0 : index
    %11 = vector.load %arg4[%c0_5, %c0_6] : memref<32x128xbf16, #tpu.memory_space<vmem>>, vector<32x128xbf16>
    tpu.vector_store %arg4[%c0_5, %c0_6], %10 {strides = array<i32>} : memref<32x128xbf16, #tpu.memory_space<vmem>>, vector<32x128xbf16>,
    return
  }
  func.func @transform_0(%arg0: i32) -> (i32, i32) {
    %c0_i32 = arith.constant 0 : i32
    %c0_i32_0 = arith.constant 0 : i32
    return %c0_i32, %arg0 : i32, i32
  }
  func.func @transform_1(%arg0: i32) -> (i32, i32) {
    %c0_i32 = arith.constant 0 : i32
    %c0_i32_0 = arith.constant 0 : i32
    %c0_i32_1 = arith.constant 0 : i32
    return %c0_i32, %c0_i32_0 : i32, i32
  }
  func.func @transform_2(%arg0: i32) -> (i32, i32) {
    %c0_i32 = arith.constant 0 : i32
    %c0_i32_0 = arith.constant 0 : i32
    %c0_i32_1 = arith.constant 0 : i32
    return %c0_i32, %c0_i32_0 : i32, i32
  }
  func.func @transform_3(%arg0: i32) -> (i32, i32) {
    %c0_i32 = arith.constant 0 : i32
    %c0_i32_0 = arith.constant 0 : i32
    return %c0_i32, %arg0 : i32, i32
  }
}

module attributes {stable_mosaic.version = 11 : i64} {
  func.func @_bn_addbn_relu_kernel(%arg0: i32, %arg1: memref<32x128xbf16, #tpu.memory_space<vmem>>, %arg2: memref<32x1xf32, #tpu.memory_space<vmem>>, %arg3: memref<32x1xf32, #tpu.memory_space<vmem>>, %arg4: memref<32x128xbf16, #tpu.memory_space<vmem>>, %arg5: memref<32x1xf32, #tpu.memory_space<vmem>>, %arg6: memref<32x1xf32, #tpu.memory_space<vmem>>, %arg7: memref<32x128xf32, #tpu.memory_space<vmem>>) attributes {dimension_semantics = [#tpu.dimension_semantics<parallel>], iteration_bounds = array<i64: 1>, scalar_prefetch = 0 : i64, scratch_operands = 0 : i64, tpu.core_type = #tpu.core_type<tc>, window_params = [{transform_indices = @transform_0, window_bounds = array<i64: 32, 128>}, {pipeline_mode = #tpu.pipeline_mode<synchronous>, transform_indices = @transform_1, window_bounds = array<i64: 32, 1>}, {pipeline_mode = #tpu.pipeline_mode<synchronous>, transform_indices = @transform_2, window_bounds = array<i64: 32, 1>}, {transform_indices = @transform_3, window_bounds = array<i64: 32, 128>}, {pipeline_mode = #tpu.pipeline_mode<synchronous>, transform_indices = @transform_4, window_bounds = array<i64: 32, 1>}, {pipeline_mode = #tpu.pipeline_mode<synchronous>, transform_indices = @transform_5, window_bounds = array<i64: 32, 1>}, {transform_indices = @transform_6, window_bounds = array<i64: 32, 128>}]} {
    %c0 = arith.constant 0 : index
    %c0_0 = arith.constant 0 : index
    %0 = vector.load %arg1[%c0, %c0_0] : memref<32x128xbf16, #tpu.memory_space<vmem>>, vector<32x128xbf16>
    %1 = arith.extf %0 : vector<32x128xbf16> to vector<32x128xf32>
    %c0_1 = arith.constant 0 : index
    %c0_2 = arith.constant 0 : index
    %2 = vector.load %arg2[%c0_1, %c0_2] : memref<32x1xf32, #tpu.memory_space<vmem>>, vector<32x1xf32>
    %3 = vector.broadcast %2 : vector<32x1xf32> to vector<32x128xf32>
    %4 = arith.mulf %1, %3 : vector<32x128xf32>
    %c0_3 = arith.constant 0 : index
    %c0_4 = arith.constant 0 : index
    %5 = vector.load %arg3[%c0_3, %c0_4] : memref<32x1xf32, #tpu.memory_space<vmem>>, vector<32x1xf32>
    %6 = vector.broadcast %5 : vector<32x1xf32> to vector<32x128xf32>
    %7 = arith.addf %4, %6 : vector<32x128xf32>
    %c0_5 = arith.constant 0 : index
    %c0_6 = arith.constant 0 : index
    %8 = vector.load %arg4[%c0_5, %c0_6] : memref<32x128xbf16, #tpu.memory_space<vmem>>, vector<32x128xbf16>
    %9 = arith.extf %8 : vector<32x128xbf16> to vector<32x128xf32>
    %c0_7 = arith.constant 0 : index
    %c0_8 = arith.constant 0 : index
    %10 = vector.load %arg5[%c0_7, %c0_8] : memref<32x1xf32, #tpu.memory_space<vmem>>, vector<32x1xf32>
    %11 = vector.broadcast %10 : vector<32x1xf32> to vector<32x128xf32>
    %12 = arith.mulf %9, %11 : vector<32x128xf32>
    %13 = arith.addf %7, %12 : vector<32x128xf32>
    %c0_9 = arith.constant 0 : index
    %c0_10 = arith.constant 0 : index
    %14 = vector.load %arg6[%c0_9, %c0_10] : memref<32x1xf32, #tpu.memory_space<vmem>>, vector<32x1xf32>
    %15 = vector.broadcast %14 : vector<32x1xf32> to vector<32x128xf32>
    %16 = arith.addf %13, %15 : vector<32x128xf32>
    %cst = arith.constant 0.000000e+00 : f32
    %17 = vector.broadcast %cst : f32 to vector<32x128xf32>
    %18 = arith.maximumf %16, %17 : vector<32x128xf32>
    %c0_11 = arith.constant 0 : index
    %c0_12 = arith.constant 0 : index
    %19 = vector.load %arg7[%c0_11, %c0_12] : memref<32x128xf32, #tpu.memory_space<vmem>>, vector<32x128xf32>
    tpu.vector_store %arg7[%c0_11, %c0_12], %18 {strides = array<i32>} : memref<32x128xf32, #tpu.memory_space<vmem>>, vector<32x128xf32>,
    return
  }
  func.func @transform_0(%arg0: i32) -> (i32, i32) {
    %c0_i32 = arith.constant 0 : i32
    %c0_i32_0 = arith.constant 0 : i32
    return %c0_i32, %arg0 : i32, i32
  }
  func.func @transform_1(%arg0: i32) -> (i32, i32) {
    %c0_i32 = arith.constant 0 : i32
    %c0_i32_0 = arith.constant 0 : i32
    %c0_i32_1 = arith.constant 0 : i32
    return %c0_i32, %c0_i32_0 : i32, i32
  }
  func.func @transform_2(%arg0: i32) -> (i32, i32) {
    %c0_i32 = arith.constant 0 : i32
    %c0_i32_0 = arith.constant 0 : i32
    %c0_i32_1 = arith.constant 0 : i32
    return %c0_i32, %c0_i32_0 : i32, i32
  }
  func.func @transform_3(%arg0: i32) -> (i32, i32) {
    %c0_i32 = arith.constant 0 : i32
    %c0_i32_0 = arith.constant 0 : i32
    return %c0_i32, %arg0 : i32, i32
  }
  func.func @transform_4(%arg0: i32) -> (i32, i32) {
    %c0_i32 = arith.constant 0 : i32
    %c0_i32_0 = arith.constant 0 : i32
    %c0_i32_1 = arith.constant 0 : i32
    return %c0_i32, %c0_i32_0 : i32, i32
  }
  func.func @transform_5(%arg0: i32) -> (i32, i32) {
    %c0_i32 = arith.constant 0 : i32
    %c0_i32_0 = arith.constant 0 : i32
    %c0_i32_1 = arith.constant 0 : i32
    return %c0_i32, %c0_i32_0 : i32, i32
  }
  func.func @transform_6(%arg0: i32) -> (i32, i32) {
    %c0_i32 = arith.constant 0 : i32
    %c0_i32_0 = arith.constant 0 : i32
    return %c0_i32, %arg0 : i32, i32
  }
}

module attributes {stable_mosaic.version = 11 : i64} {
  func.func @_conv_bnstats_kernel(%arg0: i32, %arg1: i32, %arg2: memref<16x288xbf16, #tpu.memory_space<vmem>>, %arg3: memref<288x128xbf16, #tpu.memory_space<vmem>>, %arg4: memref<16x128xbf16, #tpu.memory_space<vmem>>, %arg5: memref<16x1xf32, #tpu.memory_space<vmem>>, %arg6: memref<16x1xf32, #tpu.memory_space<vmem>>) attributes {dimension_semantics = [#tpu.dimension_semantics<parallel>, #tpu.dimension_semantics<arbitrary>], iteration_bounds = array<i64: 2, 1>, scalar_prefetch = 0 : i64, scratch_operands = 0 : i64, tpu.core_type = #tpu.core_type<tc>, window_params = [{transform_indices = @transform_0, window_bounds = array<i64: 16, 288>}, {transform_indices = @transform_1, window_bounds = array<i64: 288, 128>}, {transform_indices = @transform_2, window_bounds = array<i64: 16, 128>}, {transform_indices = @transform_3, window_bounds = array<i64: 16, 1>}, {transform_indices = @transform_4, window_bounds = array<i64: 16, 1>}]} {
    %c0 = arith.constant 0 : index
    %c0_0 = arith.constant 0 : index
    %0 = vector.load %arg2[%c0, %c0_0] : memref<16x288xbf16, #tpu.memory_space<vmem>>, vector<16x288xbf16>
    %c0_1 = arith.constant 0 : index
    %c0_2 = arith.constant 0 : index
    %1 = vector.load %arg3[%c0_1, %c0_2] : memref<288x128xbf16, #tpu.memory_space<vmem>>, vector<288x128xbf16>
    %cst = arith.constant dense<0.000000e+00> : vector<16x128xf32>
    %2 = tpu.matmul %0, %1, %cst {dimension_numbers = #tpu.dot_dimension_numbers<[1], [0], [0], [1], [0, 0, 1, 1], [], []>} : vector<16x288xbf16>, vector<288x128xbf16>, vector<16x128xf32> -> vector<16x128xf32>
    %3 = arith.truncf %2 : vector<16x128xf32> to vector<16x128xbf16>
    %c0_3 = arith.constant 0 : index
    %c0_4 = arith.constant 0 : index
    %4 = vector.load %arg4[%c0_3, %c0_4] : memref<16x128xbf16, #tpu.memory_space<vmem>>, vector<16x128xbf16>
    tpu.vector_store %arg4[%c0_3, %c0_4], %3 {strides = array<i32>} : memref<16x128xbf16, #tpu.memory_space<vmem>>, vector<16x128xbf16>,
    %c0_i32 = arith.constant 0 : i32
    %5 = arith.cmpi eq, %arg1, %c0_i32 : i32
    %6 = arith.extui %5 : i1 to i32
    %c0_i32_5 = arith.constant 0 : i32
    %7 = arith.cmpi ne, %6, %c0_i32_5 : i32
    scf.if %7 {
      %cst_16 = arith.constant 0.000000e+00 : f32
      %19 = vector.broadcast %cst_16 : f32 to vector<16x1xf32>
      %c0_17 = arith.constant 0 : index
      %c0_18 = arith.constant 0 : index
      %20 = vector.load %arg5[%c0_17, %c0_18] : memref<16x1xf32, #tpu.memory_space<vmem>>, vector<16x1xf32>
      tpu.vector_store %arg5[%c0_17, %c0_18], %19 {strides = array<i32>} : memref<16x1xf32, #tpu.memory_space<vmem>>, vector<16x1xf32>,
      %cst_19 = arith.constant 0.000000e+00 : f32
      %21 = vector.broadcast %cst_19 : f32 to vector<16x1xf32>
      %c0_20 = arith.constant 0 : index
      %c0_21 = arith.constant 0 : index
      %22 = vector.load %arg6[%c0_20, %c0_21] : memref<16x1xf32, #tpu.memory_space<vmem>>, vector<16x1xf32>
      tpu.vector_store %arg6[%c0_20, %c0_21], %21 {strides = array<i32>} : memref<16x1xf32, #tpu.memory_space<vmem>>, vector<16x1xf32>,
    } else {
    }
    %c0_6 = arith.constant 0 : index
    %c0_7 = arith.constant 0 : index
    %8 = vector.load %arg5[%c0_6, %c0_7] : memref<16x1xf32, #tpu.memory_space<vmem>>, vector<16x1xf32>
    %cst_8 = arith.constant dense<0.000000e+00> : vector<16xf32>
    %9 = vector.multi_reduction <add>, %2, %cst_8 [1] : vector<16x128xf32> to vector<16xf32>
    %10 = vector.shape_cast %9 : vector<16xf32> to vector<16x1xf32>
    %11 = arith.addf %8, %10 : vector<16x1xf32>
    %c0_9 = arith.constant 0 : index
    %c0_10 = arith.constant 0 : index
    %12 = vector.load %arg5[%c0_9, %c0_10] : memref<16x1xf32, #tpu.memory_space<vmem>>, vector<16x1xf32>
    tpu.vector_store %arg5[%c0_9, %c0_10], %11 {strides = array<i32>} : memref<16x1xf32, #tpu.memory_space<vmem>>, vector<16x1xf32>,
    %c0_11 = arith.constant 0 : index
    %c0_12 = arith.constant 0 : index
    %13 = vector.load %arg6[%c0_11, %c0_12] : memref<16x1xf32, #tpu.memory_space<vmem>>, vector<16x1xf32>
    %14 = arith.mulf %2, %2 : vector<16x128xf32>
    %cst_13 = arith.constant dense<0.000000e+00> : vector<16xf32>
    %15 = vector.multi_reduction <add>, %14, %cst_13 [1] : vector<16x128xf32> to vector<16xf32>
    %16 = vector.shape_cast %15 : vector<16xf32> to vector<16x1xf32>
    %17 = arith.addf %13, %16 : vector<16x1xf32>
    %c0_14 = arith.constant 0 : index
    %c0_15 = arith.constant 0 : index
    %18 = vector.load %arg6[%c0_14, %c0_15] : memref<16x1xf32, #tpu.memory_space<vmem>>, vector<16x1xf32>
    tpu.vector_store %arg6[%c0_14, %c0_15], %17 {strides = array<i32>} : memref<16x1xf32, #tpu.memory_space<vmem>>, vector<16x1xf32>,
    return
  }
  func.func @transform_0(%arg0: i32, %arg1: i32) -> (i32, i32) {
    %c0_i32 = arith.constant 0 : i32
    %c0_i32_0 = arith.constant 0 : i32
    return %arg0, %c0_i32 : i32, i32
  }
  func.func @transform_1(%arg0: i32, %arg1: i32) -> (i32, i32) {
    %c0_i32 = arith.constant 0 : i32
    %c0_i32_0 = arith.constant 0 : i32
    return %c0_i32, %arg1 : i32, i32
  }
  func.func @transform_2(%arg0: i32, %arg1: i32) -> (i32, i32) {
    %c0_i32 = arith.constant 0 : i32
    return %arg0, %arg1 : i32, i32
  }
  func.func @transform_3(%arg0: i32, %arg1: i32) -> (i32, i32) {
    %c0_i32 = arith.constant 0 : i32
    %c0_i32_0 = arith.constant 0 : i32
    return %arg0, %c0_i32 : i32, i32
  }
  func.func @transform_4(%arg0: i32, %arg1: i32) -> (i32, i32) {
    %c0_i32 = arith.constant 0 : i32
    %c0_i32_0 = arith.constant 0 : i32
    return %arg0, %c0_i32 : i32, i32
  }
}

</mosaic_0001>

<llo_original>
// kernel: basic_block_forward.8
$region0: #{basic_block_forward.8}
  #allocation0 [shape = 'u32[]', space=smem, size = 0x4, offset = 0x4, fixed_abs, tag = 'smem constant byte address 0x4 - core index']
  #allocation1 [shape = 'u32[144,128]{1,0:T(1,128)}', space=vmem, size = 0x12000, scoped, tag = 'internal scratch']
  %s0 = inlined_call_operand.vmem [shape: bf16[32,16], index: 0, kind: input, shape index: {}]
  %s1 = inlined_call_operand.vmem [shape: bf16[16,128], index: 1, kind: input, shape index: {}]
  %s2 = inlined_call_operand.vmem [shape: bf16[32,128], index: 2, kind: output, shape index: {0}]
  %s3 = inlined_call_operand.vmem [shape: f32[32,1], index: 3, kind: output, shape index: {1}]
  %s4 = inlined_call_operand.vmem [shape: f32[32,1], index: 4, kind: output, shape index: {2}]
  %5 = xla_tuple %s2, %s3, %s4
  %s6 = sld [smem:[#allocation0]]
  $region61: #{basic_block_forward.8} parent=0
    _
  %s8 = ssub.s32 1, %s6
  %s9 = scalar_select 0, %s8, %s6
  loop: start=0, step=1, limit=4
  $region2: #{basic_block_forward.8} parent=0 // loop_pre_header
    _
  $region3: #{basic_block_forward.8} parent=0 // loop_header
    %s11 = sphi 0, %s15
    %p12 = scmp.ge.s32.totalorder %s11, 4
    %s18 = sphi 0, %s30
    %s19 = sphi 0, %s26
    %s20 = sphi 0, %s18
    %s21 = sphi 0, %s19
    %s22 = sphi 0, %s20
    %s23 = sphi 0, %s21
    %s33 = sphi 0, %s35
    %s36 = sphi 0, %s33
    %s37 = sphi 0, %s36
    %s53 = sphi 0, %s37
    %s59 = sphi 0, %s61
    %s62 = sphi 0, %s59
    %s63 = sphi 0, %s62
    %s79 = sphi 0, %s63
    %s87 = sphi 0, %s89
    %s90 = sphi 0, %s87
    %s91 = sphi 0, %s90
    %s107 = sphi 0, %s91
    %s113 = sphi 0, %s115
    %s116 = sphi 0, %s113
    %s117 = sphi 0, %s116
    %s133 = sphi 0, %s117
    %s139 = sphi 0, %s141
    %s142 = sphi 0, %s139
    %s143 = sphi 0, %s142
    %s159 = sphi 0, %s143
  $region4: #{basic_block_forward.8} parent=0 // loop_header_branch
    %14 = sbr.rel (%p12) target = $region8
  $region5: #{basic_block_forward.8} parent=0 // loop_body
    %s16 = ssub.s32 %s11, 1
    %s17 = ssub.s32 %s11, 2
    %s24 = sadd.s32 1, %s19
    %p25 = scmp.ge.s32.totalorder %s24, 1
    %s26 = scalar_select %p25, 0, %s24
    %s27 = sadd.s32 1, %s18
    %s28 = scalar_select %p25, %s27, %s18
    %p29 = scmp.ge.s32.totalorder %s28, 2
    %s30 = scalar_select %p29, 0, %s28
    %s31 = ssub.s32 %s18, %s30
    %p32 = scmp.eq.s32.totalorder %s31, 0
    %s34 = sadd.s32 %s33, 1
    %s35 = scalar_select %p32, %s33, %s34
    %p38 = pneg %p32
    %p39 = scmp.eq.s32.totalorder %s11, 1
    %p40 = por %p38, %p39
    %p41 = scmp.ne.s32.totalorder %s33, %s36
    %p42 = scmp.eq.s32.totalorder %s11, 0
    %p43 = por %p41, %p42
    %p44 = scmp.ne.s32.totalorder %s33, %s36
    %p45 = scmp.eq.s32.totalorder %s16, 1
    %p46 = por %p44, %p45
    %p47 = scmp.ne.s32.totalorder %s36, %s37
    %p48 = scmp.eq.s32.totalorder %s16, 0
    %p49 = por %p47, %p48
    %p50 = scmp.ne.s32.totalorder %s36, %s37
    %p51 = scmp.eq.s32.totalorder %s17, 1
    %p52 = por %p50, %p51
    %p54 = scmp.ne.s32.totalorder %s37, %s53
    %p55 = scmp.eq.s32.totalorder %s17, 0
    %p56 = por %p54, %p55
    %s57 = ssub.s32 %s19, %s26
    %p58 = scmp.eq.s32.totalorder %s57, 0
    %s60 = sadd.s32 %s59, 1
    %s61 = scalar_select %p58, %s59, %s60
    %p64 = pneg %p58
    %p65 = scmp.eq.s32.totalorder %s11, 1
    %p66 = por %p64, %p65
    %p67 = scmp.ne.s32.totalorder %s59, %s62
    %p68 = scmp.eq.s32.totalorder %s11, 0
    %p69 = por %p67, %p68
    %p70 = scmp.ne.s32.totalorder %s59, %s62
    %p71 = scmp.eq.s32.totalorder %s16, 1
    %p72 = por %p70, %p71
    %p73 = scmp.ne.s32.totalorder %s62, %s63
    %p74 = scmp.eq.s32.totalorder %s16, 0
    %p75 = por %p73, %p74
    %p76 = scmp.ne.s32.totalorder %s62, %s63
    %p77 = scmp.eq.s32.totalorder %s17, 1
    %p78 = por %p76, %p77
    %p80 = scmp.ne.s32.totalorder %s63, %s79
    %p81 = scmp.eq.s32.totalorder %s17, 0
    %p82 = por %p80, %p81
    %s83 = ssub.s32 %s18, %s30
    %s84 = ssub.s32 %s19, %s26
    %s85 = sor.u32 %s83, %s84
    %p86 = scmp.eq.s32.totalorder %s85, 0
    %s88 = sadd.s32 %s87, 1
    %s89 = scalar_select %p86, %s87, %s88
    %p92 = pneg %p86
    %p93 = scmp.eq.s32.totalorder %s11, 1
    %p94 = por %p92, %p93
    %p95 = scmp.ne.s32.totalorder %s87, %s90
    %p96 = scmp.eq.s32.totalorder %s11, 0
    %p97 = por %p95, %p96
    %p98 = scmp.ne.s32.totalorder %s87, %s90
    %p99 = scmp.eq.s32.totalorder %s16, 1
    %p100 = por %p98, %p99
    %p101 = scmp.ne.s32.totalorder %s90, %s91
    %p102 = scmp.eq.s32.totalorder %s16, 0
    %p103 = por %p101, %p102
    %p104 = scmp.ne.s32.totalorder %s90, %s91
    %p105 = scmp.eq.s32.totalorder %s17, 1
    %p106 = por %p104, %p105
    %p108 = scmp.ne.s32.totalorder %s91, %s107
    %p109 = scmp.eq.s32.totalorder %s17, 0
    %p110 = por %p108, %p109
    %s111 = ssub.s32 %s18, %s30
    %p112 = scmp.eq.s32.totalorder %s111, 0
    %s114 = sadd.s32 %s113, 1
    %s115 = scalar_select %p112, %s113, %s114
    %p118 = pneg %p112
    %p119 = scmp.eq.s32.totalorder %s11, 1
    %p120 = por %p118, %p119
    %p121 = scmp.ne.s32.totalorder %s113, %s116
    %p122 = scmp.eq.s32.totalorder %s11, 0
    %p123 = por %p121, %p122
    %p124 = scmp.ne.s32.totalorder %s113, %s116
    %p125 = scmp.eq.s32.totalorder %s16, 1
    %p126 = por %p124, %p125
    %p127 = scmp.ne.s32.totalorder %s116, %s117
    %p128 = scmp.eq.s32.totalorder %s16, 0
    %p129 = por %p127, %p128
    %p130 = scmp.ne.s32.totalorder %s116, %s117
    %p131 = scmp.eq.s32.totalorder %s17, 1
    %p132 = por %p130, %p131
    %p134 = scmp.ne.s32.totalorder %s117, %s133
    %p135 = scmp.eq.s32.totalorder %s17, 0
    %p136 = por %p134, %p135
    %s137 = ssub.s32 %s18, %s30
    %p138 = scmp.eq.s32.totalorder %s137, 0
    %s140 = sadd.s32 %s139, 1
    %s141 = scalar_select %p138, %s139, %s140
    %p144 = pneg %p138
    %p145 = scmp.eq.s32.totalorder %s11, 1
    %p146 = por %p144, %p145
    %p147 = scmp.ne.s32.totalorder %s139, %s142
    %p148 = scmp.eq.s32.totalorder %s11, 0
    %p149 = por %p147, %p148
    %p150 = scmp.ne.s32.totalorder %s139, %s142
    %p151 = scmp.eq.s32.totalorder %s16, 1
    %p152 = por %p150, %p151
    %p153 = scmp.ne.s32.totalorder %s142, %s143
    %p154 = scmp.eq.s32.totalorder %s16, 0
    %p155 = por %p153, %p154
    %p156 = scmp.ne.s32.totalorder %s142, %s143
    %p157 = scmp.eq.s32.totalorder %s17, 1
    %p158 = por %p156, %p157
    %p160 = scmp.ne.s32.totalorder %s143, %s159
    %p161 = scmp.eq.s32.totalorder %s17, 0
    %p162 = por %p160, %p161
    %p163 = scmp.le.s32.totalorder 1, %s11
    %p164 = scmp.lt.s32.totalorder %s11, 3
    %p165 = pnand %p163, %p164
    %p166 = pneg %p165
    // Predicated region
    $region9: #{basic_block_forward.8} parent=5 // pred_check
      _
    $region10: #{basic_block_forward.8} parent=5 // pred_check_branch
      %168 = sbr.rel (%p165) target = $region12
    $region11: #{basic_block_forward.8} parent=5 // pred_region
      %s169 = ssub.s32 %s11, 1
      // Predicated region
      $region13: #{basic_block_forward.8} parent=11 // pred_check
        %p170 = pneg %p75
      $region14: #{basic_block_forward.8} parent=11 // pred_check_branch
        %172 = sbr.rel (%p170) target = $region16
      $region15: #{basic_block_forward.8} parent=11 // pred_region
        %p173 = scmp.lt.s32.totalorder %s21, 0
        %s174 = scalar_select %p173, %s21, 0
        %s175 = smul.addr %s174, 4
        %s176 = scalar_lea.vmem %s1, %s175
      $region16: #{basic_block_forward.8} parent=11 // pred_fallthru
        _
    $region12: #{basic_block_forward.8} parent=5 // pred_fallthru
      _
    %p177 = scmp.lt.s32.totalorder %s11, 2
    // Predicated region
    $region17: #{basic_block_forward.8} parent=5 // pred_check
      %p178 = pneg %p177
    $region18: #{basic_block_forward.8} parent=5 // pred_check_branch
      %180 = sbr.rel (%p178) target = $region20
    $region19: #{basic_block_forward.8} parent=5 // pred_region
      // Predicated region
      $region21: #{basic_block_forward.8} parent=19 // pred_check
        %p181 = pneg %p43
      $region22: #{basic_block_forward.8} parent=19 // pred_check_branch
        %183 = sbr.rel (%p181) target = $region24
      $region23: #{basic_block_forward.8} parent=19 // pred_region
        %s184 = smul.u32 2, %s18
        %p185 = scmp.lt.s32.totalorder %s184, 3
        %s186 = scalar_select %p185, %s184, 3
        %s187 = smul.addr %s186, 4
        %s188 = scalar_lea.vmem %s0, %s187
        %s189 = smul.u32 2, %s18
      $region24: #{basic_block_forward.8} parent=19 // pred_fallthru
        _
    $region20: #{basic_block_forward.8} parent=5 // pred_fallthru
      _
    %p190 = scmp.le.s32.totalorder 1, %s11
    %p191 = scmp.lt.s32.totalorder %s11, 3
    %p192 = pnand %p190, %p191
    %p193 = pneg %p192
    // Predicated region
    $region25: #{basic_block_forward.8} parent=5 // pred_check
      _
    $region26: #{basic_block_forward.8} parent=5 // pred_check_branch
      %195 = sbr.rel (%p192) target = $region28
    $region27: #{basic_block_forward.8} parent=5 // pred_region
      %s196 = ssub.s32 %s11, 1
      %s197 = smul.u32 2, %s20
      %p198 = scmp.lt.s32.totalorder %s197, 3
      %s199 = scalar_select %p198, %s197, 3
      %s200 = smul.addr %s199, 4
      %s201 = scalar_lea.vmem %s0, %s200
      %p202 = pneg %p49
      %p203 = pneg %p46
      %p204 = scmp.lt.s32.totalorder %s21, 0
      %s205 = scalar_select %p204, %s21, 0
      %s206 = smul.addr %s205, 4
      %s207 = scalar_lea.vmem %s1, %s206
      %p208 = pneg %p75
      %p209 = pneg %p72
      %p210 = pneg %p103
      %p211 = pneg %p100
      %s212 = smul.u32 2, %s20
      %p213 = scmp.lt.s32.totalorder %s212, 3
      %s214 = scalar_select %p213, %s212, 3
      %p215 = scmp.lt.s32.totalorder %s21, 0
      %s216 = scalar_select %p215, %s21, 0
      %s217 = sadd.s32 %s216, %s214
      %s218 = smul.addr %s217, 4
      %s219 = scalar_lea.vmem %s2, %s218
      %p220 = pneg %p129
      %p221 = pneg %p126
      %s222 = smul.u32 2, %s20
      %p223 = scmp.lt.s32.totalorder %s222, 3
      %s224 = scalar_select %p223, %s222, 3
      %s225 = smul.addr %s224, 8
      %s226 = scalar_lea.vmem %s3, %s225
      %p227 = pneg %p155
      %p228 = pneg %p152
      %s229 = smul.u32 2, %s20
      %p230 = scmp.lt.s32.totalorder %s229, 3
      %s231 = scalar_select %p230, %s229, 3
      %s232 = smul.addr %s231, 8
      %s233 = scalar_lea.vmem %s4, %s232
      %s234 = smul.u32 2, %s20
      %p235 = scmp.lt.s32.totalorder %s234, 3
      %s236 = scalar_select %p235, %s234, 3
      %s237 = smul.addr %s236, 4
      %s238 = scalar_lea.vmem %s0, %s237
      %s239 = smul.u32 2, %s20
      %p240 = scmp.lt.s32.totalorder %s21, 0
      %s241 = scalar_select %p240, %s21, 0
      %s242 = smul.addr %s241, 4
      %s243 = scalar_lea.vmem %s1, %s242
      %s244 = smul.u32 2, %s20
      %p245 = scmp.lt.s32.totalorder %s244, 3
      %s246 = scalar_select %p245, %s244, 3
      %p247 = scmp.lt.s32.totalorder %s21, 0
      %s248 = scalar_select %p247, %s21, 0
      %s249 = sadd.s32 %s248, %s246
      %s250 = smul.addr %s249, 4
      %s251 = scalar_lea.vmem %s2, %s250
      %s252 = smul.u32 2, %s20
      %s253 = smul.u32 2, %s20
      %p254 = scmp.lt.s32.totalorder %s253, 3
      %s255 = scalar_select %p254, %s253, 3
      %s256 = smul.addr %s255, 8
      %s257 = scalar_lea.vmem %s3, %s256
      %s258 = smul.u32 2, %s20
      %s259 = smul.u32 2, %s20
      %p260 = scmp.lt.s32.totalorder %s259, 3
      %s261 = scalar_select %p260, %s259, 3
      %s262 = smul.addr %s261, 8
      %s263 = scalar_lea.vmem %s4, %s262
      %s264 = smul.u32 2, %s20
      %v266 = vld [vmem:[%s238] sm:$0xf]
      %v267 = vld [vmem:[%s238 + $0x4] sm:$0xf]
      %v268 = vld [vmem:[%s243] sm:$0xf]
      %v269 = vld [vmem:[%s243 + $0x4] sm:$0xf]
      %v272 = vunpack.c.l.b16 %v266
      %v273 = vunpack.c.l.b16 %v267
      %v274 = vpack.c.b16 %v273, %v272
      %v277 = vunpack.c.l.b16 %v268
      %v278 = vunpack.c.l.b16 %v269
      %v279 = vpack.c.b16 %v278, %v277
      %vm281 = vcmask 130048
      %v283 = vsel %vm281, %v274, 0
      %285 = vmatprep.subr.bf16.mxu0 0
      %286 = vmatpush1.bf16.msra.mxu0 %v279
      %287 = vmatprep.subr.bf16.mxu0 0
      %288 = vmatpush1.bf16.msra.mxu0 0
      %289 = vmatprep.subr.bf16.mxu0 0
      %290 = vmatpush1.bf16.msra.mxu0 0
      %291 = vmatprep.subr.bf16.mxu0 0
      %292 = vmatpush1.bf16.msra.mxu0 0
      %293 = vmatprep.subr.bf16.mxu0 0
      %294 = vmatpush1.bf16.msra.mxu0 0
      %295 = vmatprep.subr.bf16.mxu0 0
      %296 = vmatpush1.bf16.msra.mxu0 0
      %297 = vmatprep.subr.bf16.mxu0 0
      %298 = vmatpush1.bf16.msra.mxu0 0
      %299 = vmatprep.subr.bf16.mxu0 0
      %300 = vmatpush1.bf16.msra.mxu0 0
      %301 = vmatprep.subr.bf16.mxu0 0
      %302 = vmatpush1.bf16.msra.mxu0 0
      %303 = vmatprep.subr.bf16.mxu0 0
      %304 = vmatpush1.bf16.msra.mxu0 0
      %305 = vmatprep.subr.bf16.mxu0 0
      %306 = vmatpush1.bf16.msra.mxu0 0
      %307 = vmatprep.subr.bf16.mxu0 0
      %308 = vmatpush1.bf16.msra.mxu0 0
      %309 = vmatprep.subr.bf16.mxu0 0
      %310 = vmatpush1.bf16.msra.mxu0 0
      %311 = vmatprep.subr.bf16.mxu0 0
      %312 = vmatpush1.bf16.msra.mxu0 0
      %313 = vmatprep.subr.bf16.mxu0 0
      %314 = vmatpush1.bf16.msra.mxu0 0
      %315 = vmatprep.subr.bf16.mxu0 0
      %316 = vmatpush1.bf16.msra.mxu0 0
      %317 = vmatprep.mubr.bf16.mxu0 0
      %318 = vmatmul.mubr.bf16.gmra.mrb[0].mxu0 %v283
      %v319 = vpop.f32.mrb[0].mxu0
      %v320 = vadd.f32 0.0, %v319
      %v321 = vpop.f32.mrb[0].mxu0
      %v322 = vpop.f32.mrb[0].mxu0
      %v323 = vadd.f32 0.0, %v322
      %v324 = vpop.f32.mrb[0].mxu0
      %325 = vdwg.mxu0
      %v326 = vpack.c.bf16 %v323, %v320
      %v328 = vunpack.c.l.b16 %v326
      %v329 = vunpack.c.h.b16 %v326
      %v330 = vpack.c.b16 %v328, %v328
      %v331 = vpack.c.b16 %v329, %v329
      %334 = vst [vmem:[%s251] sm:$0xf] %v330
      %335 = vst [vmem:[%s251 + $0x4] sm:$0xf] %v331
      %p336 = scmp.eq.s32.totalorder %s21, 0
      // Predicated region
      $region29: #{basic_block_forward.8} parent=27 // pred_check
        %p337 = pneg %p336
      $region30: #{basic_block_forward.8} parent=27 // pred_check_branch
        %339 = sbr.rel (%p337) target = $region32
      $region31: #{basic_block_forward.8} parent=27 // pred_region
        %vm340 = vcmask 7168
        %341 = vst.msk [vmem:[%s257] sm:$0xff] %vm340, 0.0
        %342 = vst.msk [vmem:[%s257 + $0x8] sm:$0xff] %vm340, 0.0
        %343 = vst.msk [vmem:[%s263] sm:$0xff] %vm340, 0.0
        %344 = vst.msk [vmem:[%s263 + $0x8] sm:$0xff] %vm340, 0.0
      $region32: #{basic_block_forward.8} parent=27 // pred_fallthru
        _
      %v345 = vld [vmem:[%s257] sm:$0xff]
      %v346 = vld [vmem:[%s257 + $0x8] sm:$0xff]
      %347 = vadd.xlane.f32.xlu0 %v320
      %v348 = vpop.xlane.xlu0 %347
      %349 = vadd.xlane.f32.xlu0 %v323
      %v350 = vpop.xlane.xlu0 %349
      %v351 = vadd.f32 %v345, %v348
      %v352 = vadd.f32 %v346, %v350
      %vm353 = vcmask 7168
      %354 = vst.msk [vmem:[%s257] sm:$0xff] %vm353, %v351
      %355 = vst.msk [vmem:[%s257 + $0x8] sm:$0xff] %vm353, %v352
      %v356 = vld [vmem:[%s263] sm:$0xff]
      %v357 = vld [vmem:[%s263 + $0x8] sm:$0xff]
      %v358 = vmul.f32 %v320, %v320
      %v359 = vmul.f32 %v323, %v323
      %360 = vadd.xlane.f32.xlu0 %v358
      %v361 = vpop.xlane.xlu0 %360
      %362 = vadd.xlane.f32.xlu0 %v359
      %v363 = vpop.xlane.xlu0 %362
      %v364 = vadd.f32 %v356, %v361
      %v365 = vadd.f32 %v357, %v363
      %366 = vst.msk [vmem:[%s263] sm:$0xff] %vm353, %v364
      %367 = vst.msk [vmem:[%s263 + $0x8] sm:$0xff] %vm353, %v365
      %s368 = smul.u32 2, %s20
      %p369 = scmp.lt.s32.totalorder %s368, 3
      %s370 = scalar_select %p369, %s368, 3
      %p371 = scmp.lt.s32.totalorder %s21, 0
      %s372 = scalar_select %p371, %s21, 0
      %s373 = sadd.s32 %s372, %s370
      %s374 = smul.addr %s373, 4
      %s375 = scalar_lea.vmem %s2, %s374
      %s376 = smul.u32 2, %s20
      %p377 = scmp.lt.s32.totalorder %s376, 3
      %s378 = scalar_select %p377, %s376, 3
      %s379 = smul.addr %s378, 8
      %s380 = scalar_lea.vmem %s3, %s379
      %s381 = smul.u32 2, %s20
      %p382 = scmp.lt.s32.totalorder %s381, 3
      %s383 = scalar_select %p382, %s381, 3
      %s384 = smul.addr %s383, 8
      %s385 = scalar_lea.vmem %s4, %s384
      // Predicated region
      $region33: #{basic_block_forward.8} parent=27 // pred_check
        %p386 = pneg %p100
      $region34: #{basic_block_forward.8} parent=27 // pred_check_branch
        %388 = sbr.rel (%p386) target = $region36
      $region35: #{basic_block_forward.8} parent=27 // pred_region
        %s389 = smul.u32 2, %s20
      $region36: #{basic_block_forward.8} parent=27 // pred_fallthru
        _
      // Predicated region
      $region37: #{basic_block_forward.8} parent=27 // pred_check
        %p390 = pneg %p126
      $region38: #{basic_block_forward.8} parent=27 // pred_check_branch
        %392 = sbr.rel (%p390) target = $region40
      $region39: #{basic_block_forward.8} parent=27 // pred_region
        %s393 = smul.u32 2, %s20
      $region40: #{basic_block_forward.8} parent=27 // pred_fallthru
        _
      // Predicated region
      $region41: #{basic_block_forward.8} parent=27 // pred_check
        %p394 = pneg %p152
      $region42: #{basic_block_forward.8} parent=27 // pred_check_branch
        %396 = sbr.rel (%p394) target = $region44
      $region43: #{basic_block_forward.8} parent=27 // pred_region
        %s397 = smul.u32 2, %s20
      $region44: #{basic_block_forward.8} parent=27 // pred_fallthru
        _
    $region28: #{basic_block_forward.8} parent=5 // pred_fallthru
      _
    %p398 = scmp.le.s32.totalorder 2, %s11
    // Predicated region
    $region45: #{basic_block_forward.8} parent=5 // pred_check
      %p399 = pneg %p398
    $region46: #{basic_block_forward.8} parent=5 // pred_check_branch
      %401 = sbr.rel (%p399) target = $region48
    $region47: #{basic_block_forward.8} parent=5 // pred_region
      %s402 = ssub.s32 %s11, 2
      // Predicated region
      $region49: #{basic_block_forward.8} parent=47 // pred_check
        %p403 = pneg %p106
      $region50: #{basic_block_forward.8} parent=47 // pred_check_branch
        %405 = sbr.rel (%p403) target = $region52
      $region51: #{basic_block_forward.8} parent=47 // pred_region
        %s406 = smul.u32 2, %s22
        %p407 = scmp.lt.s32.totalorder %s406, 3
        %s408 = scalar_select %p407, %s406, 3
        %p409 = scmp.lt.s32.totalorder %s23, 0
        %s410 = scalar_select %p409, %s23, 0
        %s411 = sadd.s32 %s410, %s408
        %s412 = smul.addr %s411, 4
        %s413 = scalar_lea.vmem %s2, %s412
      $region52: #{basic_block_forward.8} parent=47 // pred_fallthru
        _
      // Predicated region
      $region53: #{basic_block_forward.8} parent=47 // pred_check
        %p414 = pneg %p132
      $region54: #{basic_block_forward.8} parent=47 // pred_check_branch
        %416 = sbr.rel (%p414) target = $region56
      $region55: #{basic_block_forward.8} parent=47 // pred_region
        %s417 = smul.u32 2, %s22
        %p418 = scmp.lt.s32.totalorder %s417, 3
        %s419 = scalar_select %p418, %s417, 3
        %s420 = smul.addr %s419, 8
        %s421 = scalar_lea.vmem %s3, %s420
      $region56: #{basic_block_forward.8} parent=47 // pred_fallthru
        _
      // Predicated region
      $region57: #{basic_block_forward.8} parent=47 // pred_check
        %p422 = pneg %p158
      $region58: #{basic_block_forward.8} parent=47 // pred_check_branch
        %424 = sbr.rel (%p422) target = $region60
      $region59: #{basic_block_forward.8} parent=47 // pred_region
        %s425 = smul.u32 2, %s22
        %p426 = scmp.lt.s32.totalorder %s425, 3
        %s427 = scalar_select %p426, %s425, 3
        %s428 = smul.addr %s427, 8
        %s429 = scalar_lea.vmem %s4, %s428
      $region60: #{basic_block_forward.8} parent=47 // pred_fallthru
        _
    $region48: #{basic_block_forward.8} parent=5 // pred_fallthru
      _
  $region6: #{basic_block_forward.8} parent=0 // loop_footer
    %s15 = sadd.s32 1, %s11
  $region7: #{basic_block_forward.8} parent=0 // loop_footer_branch
    %10 = sbr.rel target = $region3
  $region8: #{basic_block_forward.8} parent=0 // loop_exit
    _

// kernel: basic_block_forward.5
$region0: #{basic_block_forward.5}
  #allocation0 [shape = 'u32[]', space=smem, size = 0x4, offset = 0x4, fixed_abs, tag = 'smem constant byte address 0x4 - core index']
  #allocation1 [shape = 'u32[144,128]{1,0:T(1,128)}', space=vmem, size = 0x12000, scoped, tag = 'internal scratch']
  %s0 = inlined_call_operand.vmem [shape: bf16[32,144], index: 0, kind: input, shape index: {}]
  %s1 = inlined_call_operand.vmem [shape: bf16[144,128], index: 1, kind: input, shape index: {}]
  %s2 = inlined_call_operand.vmem [shape: bf16[32,128], index: 2, kind: output, shape index: {0}]
  %s3 = inlined_call_operand.vmem [shape: f32[32,1], index: 3, kind: output, shape index: {1}]
  %s4 = inlined_call_operand.vmem [shape: f32[32,1], index: 4, kind: output, shape index: {2}]
  %5 = xla_tuple %s2, %s3, %s4
  %s6 = sld [smem:[#allocation0]]
  $region61: #{basic_block_forward.5} parent=0
    _
  %s8 = ssub.s32 1, %s6
  %s9 = scalar_select 0, %s8, %s6
  loop: start=0, step=1, limit=4
  $region2: #{basic_block_forward.5} parent=0 // loop_pre_header
    _
  $region3: #{basic_block_forward.5} parent=0 // loop_header
    %s11 = sphi 0, %s15
    %p12 = scmp.ge.s32.totalorder %s11, 4
    %s18 = sphi 0, %s30
    %s19 = sphi 0, %s26
    %s20 = sphi 0, %s18
    %s21 = sphi 0, %s19
    %s22 = sphi 0, %s20
    %s23 = sphi 0, %s21
    %s33 = sphi 0, %s35
    %s36 = sphi 0, %s33
    %s37 = sphi 0, %s36
    %s53 = sphi 0, %s37
    %s59 = sphi 0, %s61
    %s62 = sphi 0, %s59
    %s63 = sphi 0, %s62
    %s79 = sphi 0, %s63
    %s87 = sphi 0, %s89
    %s90 = sphi 0, %s87
    %s91 = sphi 0, %s90
    %s107 = sphi 0, %s91
    %s113 = sphi 0, %s115
    %s116 = sphi 0, %s113
    %s117 = sphi 0, %s116
    %s133 = sphi 0, %s117
    %s139 = sphi 0, %s141
    %s142 = sphi 0, %s139
    %s143 = sphi 0, %s142
    %s159 = sphi 0, %s143
  $region4: #{basic_block_forward.5} parent=0 // loop_header_branch
    %14 = sbr.rel (%p12) target = $region8
  $region5: #{basic_block_forward.5} parent=0 // loop_body
    %s16 = ssub.s32 %s11, 1
    %s17 = ssub.s32 %s11, 2
    %s24 = sadd.s32 1, %s19
    %p25 = scmp.ge.s32.totalorder %s24, 1
    %s26 = scalar_select %p25, 0, %s24
    %s27 = sadd.s32 1, %s18
    %s28 = scalar_select %p25, %s27, %s18
    %p29 = scmp.ge.s32.totalorder %s28, 2
    %s30 = scalar_select %p29, 0, %s28
    %s31 = ssub.s32 %s18, %s30
    %p32 = scmp.eq.s32.totalorder %s31, 0
    %s34 = sadd.s32 %s33, 1
    %s35 = scalar_select %p32, %s33, %s34
    %p38 = pneg %p32
    %p39 = scmp.eq.s32.totalorder %s11, 1
    %p40 = por %p38, %p39
    %p41 = scmp.ne.s32.totalorder %s33, %s36
    %p42 = scmp.eq.s32.totalorder %s11, 0
    %p43 = por %p41, %p42
    %p44 = scmp.ne.s32.totalorder %s33, %s36
    %p45 = scmp.eq.s32.totalorder %s16, 1
    %p46 = por %p44, %p45
    %p47 = scmp.ne.s32.totalorder %s36, %s37
    %p48 = scmp.eq.s32.totalorder %s16, 0
    %p49 = por %p47, %p48
    %p50 = scmp.ne.s32.totalorder %s36, %s37
    %p51 = scmp.eq.s32.totalorder %s17, 1
    %p52 = por %p50, %p51
    %p54 = scmp.ne.s32.totalorder %s37, %s53
    %p55 = scmp.eq.s32.totalorder %s17, 0
    %p56 = por %p54, %p55
    %s57 = ssub.s32 %s19, %s26
    %p58 = scmp.eq.s32.totalorder %s57, 0
    %s60 = sadd.s32 %s59, 1
    %s61 = scalar_select %p58, %s59, %s60
    %p64 = pneg %p58
    %p65 = scmp.eq.s32.totalorder %s11, 1
    %p66 = por %p64, %p65
    %p67 = scmp.ne.s32.totalorder %s59, %s62
    %p68 = scmp.eq.s32.totalorder %s11, 0
    %p69 = por %p67, %p68
    %p70 = scmp.ne.s32.totalorder %s59, %s62
    %p71 = scmp.eq.s32.totalorder %s16, 1
    %p72 = por %p70, %p71
    %p73 = scmp.ne.s32.totalorder %s62, %s63
    %p74 = scmp.eq.s32.totalorder %s16, 0
    %p75 = por %p73, %p74
    %p76 = scmp.ne.s32.totalorder %s62, %s63
    %p77 = scmp.eq.s32.totalorder %s17, 1
    %p78 = por %p76, %p77
    %p80 = scmp.ne.s32.totalorder %s63, %s79
    %p81 = scmp.eq.s32.totalorder %s17, 0
    %p82 = por %p80, %p81
    %s83 = ssub.s32 %s18, %s30
    %s84 = ssub.s32 %s19, %s26
    %s85 = sor.u32 %s83, %s84
    %p86 = scmp.eq.s32.totalorder %s85, 0
    %s88 = sadd.s32 %s87, 1
    %s89 = scalar_select %p86, %s87, %s88
    %p92 = pneg %p86
    %p93 = scmp.eq.s32.totalorder %s11, 1
    %p94 = por %p92, %p93
    %p95 = scmp.ne.s32.totalorder %s87, %s90
    %p96 = scmp.eq.s32.totalorder %s11, 0
    %p97 = por %p95, %p96
    %p98 = scmp.ne.s32.totalorder %s87, %s90
    %p99 = scmp.eq.s32.totalorder %s16, 1
    %p100 = por %p98, %p99
    %p101 = scmp.ne.s32.totalorder %s90, %s91
    %p102 = scmp.eq.s32.totalorder %s16, 0
    %p103 = por %p101, %p102
    %p104 = scmp.ne.s32.totalorder %s90, %s91
    %p105 = scmp.eq.s32.totalorder %s17, 1
    %p106 = por %p104, %p105
    %p108 = scmp.ne.s32.totalorder %s91, %s107
    %p109 = scmp.eq.s32.totalorder %s17, 0
    %p110 = por %p108, %p109
    %s111 = ssub.s32 %s18, %s30
    %p112 = scmp.eq.s32.totalorder %s111, 0
    %s114 = sadd.s32 %s113, 1
    %s115 = scalar_select %p112, %s113, %s114
    %p118 = pneg %p112
    %p119 = scmp.eq.s32.totalorder %s11, 1
    %p120 = por %p118, %p119
    %p121 = scmp.ne.s32.totalorder %s113, %s116
    %p122 = scmp.eq.s32.totalorder %s11, 0
    %p123 = por %p121, %p122
    %p124 = scmp.ne.s32.totalorder %s113, %s116
    %p125 = scmp.eq.s32.totalorder %s16, 1
    %p126 = por %p124, %p125
    %p127 = scmp.ne.s32.totalorder %s116, %s117
    %p128 = scmp.eq.s32.totalorder %s16, 0
    %p129 = por %p127, %p128
    %p130 = scmp.ne.s32.totalorder %s116, %s117
    %p131 = scmp.eq.s32.totalorder %s17, 1
    %p132 = por %p130, %p131
    %p134 = scmp.ne.s32.totalorder %s117, %s133
    %p135 = scmp.eq.s32.totalorder %s17, 0
    %p136 = por %p134, %p135
    %s137 = ssub.s32 %s18, %s30
    %p138 = scmp.eq.s32.totalorder %s137, 0
    %s140 = sadd.s32 %s139, 1
    %s141 = scalar_select %p138, %s139, %s140
    %p144 = pneg %p138
    %p145 = scmp.eq.s32.totalorder %s11, 1
    %p146 = por %p144, %p145
    %p147 = scmp.ne.s32.totalorder %s139, %s142
    %p148 = scmp.eq.s32.totalorder %s11, 0
    %p149 = por %p147, %p148
    %p150 = scmp.ne.s32.totalorder %s139, %s142
    %p151 = scmp.eq.s32.totalorder %s16, 1
    %p152 = por %p150, %p151
    %p153 = scmp.ne.s32.totalorder %s142, %s143
    %p154 = scmp.eq.s32.totalorder %s16, 0
    %p155 = por %p153, %p154
    %p156 = scmp.ne.s32.totalorder %s142, %s143
    %p157 = scmp.eq.s32.totalorder %s17, 1
    %p158 = por %p156, %p157
    %p160 = scmp.ne.s32.totalorder %s143, %s159
    %p161 = scmp.eq.s32.totalorder %s17, 0
    %p162 = por %p160, %p161
    %p163 = scmp.le.s32.totalorder 1, %s11
    %p164 = scmp.lt.s32.totalorder %s11, 3
    %p165 = pnand %p163, %p164
    %p166 = pneg %p165
    // Predicated region
    $region9: #{basic_block_forward.5} parent=5 // pred_check
      _
    $region10: #{basic_block_forward.5} parent=5 // pred_check_branch
      %168 = sbr.rel (%p165) target = $region12
    $region11: #{basic_block_forward.5} parent=5 // pred_region
      %s169 = ssub.s32 %s11, 1
      // Predicated region
      $region13: #{basic_block_forward.5} parent=11 // pred_check
        %p170 = pneg %p75
      $region14: #{basic_block_forward.5} parent=11 // pred_check_branch
        %172 = sbr.rel (%p170) target = $region16
      $region15: #{basic_block_forward.5} parent=11 // pred_region
        %p173 = scmp.lt.s32.totalorder %s21, 0
        %s174 = scalar_select %p173, %s21, 0
        %s175 = smul.addr %s174, 4
        %s176 = scalar_lea.vmem %s1, %s175
      $region16: #{basic_block_forward.5} parent=11 // pred_fallthru
        _
    $region12: #{basic_block_forward.5} parent=5 // pred_fallthru
      _
    %p177 = scmp.lt.s32.totalorder %s11, 2
    // Predicated region
    $region17: #{basic_block_forward.5} parent=5 // pred_check
      %p178 = pneg %p177
    $region18: #{basic_block_forward.5} parent=5 // pred_check_branch
      %180 = sbr.rel (%p178) target = $region20
    $region19: #{basic_block_forward.5} parent=5 // pred_region
      // Predicated region
      $region21: #{basic_block_forward.5} parent=19 // pred_check
        %p181 = pneg %p43
      $region22: #{basic_block_forward.5} parent=19 // pred_check_branch
        %183 = sbr.rel (%p181) target = $region24
      $region23: #{basic_block_forward.5} parent=19 // pred_region
        %s184 = smul.u32 2, %s18
        %p185 = scmp.lt.s32.totalorder %s184, 3
        %s186 = scalar_select %p185, %s184, 3
        %s187 = smul.addr %s186, 2
        %s188 = smul.addr %s187, 4
        %s189 = scalar_lea.vmem %s0, %s188
        %s190 = smul.u32 2, %s18
      $region24: #{basic_block_forward.5} parent=19 // pred_fallthru
        _
    $region20: #{basic_block_forward.5} parent=5 // pred_fallthru
      _
    %p191 = scmp.le.s32.totalorder 1, %s11
    %p192 = scmp.lt.s32.totalorder %s11, 3
    %p193 = pnand %p191, %p192
    %p194 = pneg %p193
    // Predicated region
    $region25: #{basic_block_forward.5} parent=5 // pred_check
      _
    $region26: #{basic_block_forward.5} parent=5 // pred_check_branch
      %196 = sbr.rel (%p193) target = $region28
    $region27: #{basic_block_forward.5} parent=5 // pred_region
      %s197 = ssub.s32 %s11, 1
      %s198 = smul.u32 2, %s20
      %p199 = scmp.lt.s32.totalorder %s198, 3
      %s200 = scalar_select %p199, %s198, 3
      %s201 = smul.addr %s200, 2
      %s202 = smul.addr %s201, 4
      %s203 = scalar_lea.vmem %s0, %s202
      %p204 = pneg %p49
      %p205 = pneg %p46
      %p206 = scmp.lt.s32.totalorder %s21, 0
      %s207 = scalar_select %p206, %s21, 0
      %s208 = smul.addr %s207, 4
      %s209 = scalar_lea.vmem %s1, %s208
      %p210 = pneg %p75
      %p211 = pneg %p72
      %p212 = pneg %p103
      %p213 = pneg %p100
      %s214 = smul.u32 2, %s20
      %p215 = scmp.lt.s32.totalorder %s214, 3
      %s216 = scalar_select %p215, %s214, 3
      %p217 = scmp.lt.s32.totalorder %s21, 0
      %s218 = scalar_select %p217, %s21, 0
      %s219 = sadd.s32 %s218, %s216
      %s220 = smul.addr %s219, 4
      %s221 = scalar_lea.vmem %s2, %s220
      %p222 = pneg %p129
      %p223 = pneg %p126
      %s224 = smul.u32 2, %s20
      %p225 = scmp.lt.s32.totalorder %s224, 3
      %s226 = scalar_select %p225, %s224, 3
      %s227 = smul.addr %s226, 8
      %s228 = scalar_lea.vmem %s3, %s227
      %p229 = pneg %p155
      %p230 = pneg %p152
      %s231 = smul.u32 2, %s20
      %p232 = scmp.lt.s32.totalorder %s231, 3
      %s233 = scalar_select %p232, %s231, 3
      %s234 = smul.addr %s233, 8
      %s235 = scalar_lea.vmem %s4, %s234
      %s236 = smul.u32 2, %s20
      %p237 = scmp.lt.s32.totalorder %s236, 3
      %s238 = scalar_select %p237, %s236, 3
      %s239 = smul.addr %s238, 2
      %s240 = smul.addr %s239, 4
      %s241 = scalar_lea.vmem %s0, %s240
      %s242 = smul.u32 2, %s20
      %p243 = scmp.lt.s32.totalorder %s21, 0
      %s244 = scalar_select %p243, %s21, 0
      %s245 = smul.addr %s244, 4
      %s246 = scalar_lea.vmem %s1, %s245
      %s247 = smul.u32 2, %s20
      %p248 = scmp.lt.s32.totalorder %s247, 3
      %s249 = scalar_select %p248, %s247, 3
      %p250 = scmp.lt.s32.totalorder %s21, 0
      %s251 = scalar_select %p250, %s21, 0
      %s252 = sadd.s32 %s251, %s249
      %s253 = smul.addr %s252, 4
      %s254 = scalar_lea.vmem %s2, %s253
      %s255 = smul.u32 2, %s20
      %s256 = smul.u32 2, %s20
      %p257 = scmp.lt.s32.totalorder %s256, 3
      %s258 = scalar_select %p257, %s256, 3
      %s259 = smul.addr %s258, 8
      %s260 = scalar_lea.vmem %s3, %s259
      %s261 = smul.u32 2, %s20
      %s262 = smul.u32 2, %s20
      %p263 = scmp.lt.s32.totalorder %s262, 3
      %s264 = scalar_select %p263, %s262, 3
      %s265 = smul.addr %s264, 8
      %s266 = scalar_lea.vmem %s4, %s265
      %s267 = smul.u32 2, %s20
      %v269 = vld [vmem:[%s241] sm:$0xff]
      %v270 = vld [vmem:[%s241 + $0x8] sm:$0xff]
      %v271 = vld [vmem:[%s246] sm:$0xf]
      %v272 = vld [vmem:[%s246 + $0x4] sm:$0xf]
      %v273 = vld [vmem:[%s246 + $0x8] sm:$0xf]
      %v274 = vld [vmem:[%s246 + $0xc] sm:$0xf]
      %v275 = vld [vmem:[%s246 + $0x10] sm:$0xf]
      %v276 = vld [vmem:[%s246 + $0x14] sm:$0xf]
      %v277 = vld [vmem:[%s246 + $0x18] sm:$0xf]
      %v278 = vld [vmem:[%s246 + $0x1c] sm:$0xf]
      %v279 = vld [vmem:[%s246 + $0x20] sm:$0xf]
      %v280 = vld [vmem:[%s246 + $0x24] sm:$0xf]
      %v281 = vld [vmem:[%s246 + $0x28] sm:$0xf]
      %v282 = vld [vmem:[%s246 + $0x2c] sm:$0xf]
      %v283 = vld [vmem:[%s246 + $0x30] sm:$0xf]
      %v284 = vld [vmem:[%s246 + $0x34] sm:$0xf]
      %v285 = vld [vmem:[%s246 + $0x38] sm:$0xf]
      %v286 = vld [vmem:[%s246 + $0x3c] sm:$0xf]
      %v287 = vld [vmem:[%s246 + $0x40] sm:$0xf]
      %v288 = vld [vmem:[%s246 + $0x44] sm:$0xf]
      %v291 = vunpack.c.l.b16 %v269
      %v292 = vunpack.c.h.b16 %v269
      %v293 = vunpack.c.l.b16 %v270
      %v294 = vunpack.c.h.b16 %v270
      %v295 = vpack.c.b16 %v293, %v291
      %v296 = vpack.c.b16 %v294, %v292
      %v316 = vunpack.c.l.b16 %v271
      %v317 = vunpack.c.l.b16 %v272
      %v318 = vunpack.c.l.b16 %v273
      %v319 = vunpack.c.l.b16 %v274
      %v320 = vunpack.c.l.b16 %v275
      %v321 = vunpack.c.l.b16 %v276
      %v322 = vunpack.c.l.b16 %v277
      %v323 = vunpack.c.l.b16 %v278
      %v324 = vunpack.c.l.b16 %v279
      %v325 = vunpack.c.l.b16 %v280
      %v326 = vunpack.c.l.b16 %v281
      %v327 = vunpack.c.l.b16 %v282
      %v328 = vunpack.c.l.b16 %v283
      %v329 = vunpack.c.l.b16 %v284
      %v330 = vunpack.c.l.b16 %v285
      %v331 = vunpack.c.l.b16 %v286
      %v332 = vunpack.c.l.b16 %v287
      %v333 = vunpack.c.l.b16 %v288
      %v334 = vpack.c.b16 %v317, %v316
      %v335 = vpack.c.b16 %v319, %v318
      %v336 = vpack.c.b16 %v321, %v320
      %v337 = vpack.c.b16 %v323, %v322
      %v338 = vpack.c.b16 %v325, %v324
      %v339 = vpack.c.b16 %v327, %v326
      %v340 = vpack.c.b16 %v329, %v328
      %v341 = vpack.c.b16 %v331, %v330
      %v342 = vpack.c.b16 %v333, %v332
      %vm352 = vcmask 130048
      %v354 = vsel %vm352, %v296, 0
      %356 = vmatprep.subr.bf16.mxu0 0
      %357 = vmatpush1.bf16.msra.mxu0 %v334
      %358 = vmatprep.subr.bf16.mxu0 0
      %359 = vmatpush1.bf16.msra.mxu0 %v335
      %360 = vmatprep.subr.bf16.mxu0 0
      %361 = vmatpush1.bf16.msra.mxu0 %v336
      %362 = vmatprep.subr.bf16.mxu0 0
      %363 = vmatpush1.bf16.msra.mxu0 %v337
      %364 = vmatprep.subr.bf16.mxu0 0
      %365 = vmatpush1.bf16.msra.mxu0 %v338
      %366 = vmatprep.subr.bf16.mxu0 0
      %367 = vmatpush1.bf16.msra.mxu0 %v339
      %368 = vmatprep.subr.bf16.mxu0 0
      %369 = vmatpush1.bf16.msra.mxu0 %v340
      %370 = vmatprep.subr.bf16.mxu0 0
      %371 = vmatpush1.bf16.msra.mxu0 %v341
      %372 = vmatprep.subr.bf16.mxu0 0
      %373 = vmatpush1.bf16.msra.mxu0 %v342
      %374 = vmatprep.subr.bf16.mxu0 0
      %375 = vmatpush1.bf16.msra.mxu0 0
      %376 = vmatprep.subr.bf16.mxu0 0
      %377 = vmatpush1.bf16.msra.mxu0 0
      %378 = vmatprep.subr.bf16.mxu0 0
      %379 = vmatpush1.bf16.msra.mxu0 0
      %380 = vmatprep.subr.bf16.mxu0 0
      %381 = vmatpush1.bf16.msra.mxu0 0
      %382 = vmatprep.subr.bf16.mxu0 0
      %383 = vmatpush1.bf16.msra.mxu0 0
      %384 = vmatprep.subr.bf16.mxu0 0
      %385 = vmatpush1.bf16.msra.mxu0 0
      %386 = vmatprep.subr.bf16.mxu0 0
      %387 = vmatpush1.bf16.msra.mxu0 0
      %388 = vmatprep.mubr.bf16.mxu0 %v354
      %389 = vmatmul.mubr.bf16.gmra.mrb[0].mxu0 %v295
      %v390 = vpop.f32.mrb[0].mxu0
      %v391 = vadd.f32 0.0, %v390
      %v392 = vpop.f32.mrb[0].mxu0
      %v393 = vpop.f32.mrb[0].mxu0
      %v394 = vadd.f32 0.0, %v393
      %v395 = vpop.f32.mrb[0].mxu0
      %396 = vdwg.mxu0
      %v397 = vpack.c.bf16 %v394, %v391
      %v399 = vunpack.c.l.b16 %v397
      %v400 = vunpack.c.h.b16 %v397
      %v401 = vpack.c.b16 %v399, %v399
      %v402 = vpack.c.b16 %v400, %v400
      %405 = vst [vmem:[%s254] sm:$0xf] %v401
      %406 = vst [vmem:[%s254 + $0x4] sm:$0xf] %v402
      %p407 = scmp.eq.s32.totalorder %s21, 0
      // Predicated region
      $region29: #{basic_block_forward.5} parent=27 // pred_check
        %p408 = pneg %p407
      $region30: #{basic_block_forward.5} parent=27 // pred_check_branch
        %410 = sbr.rel (%p408) target = $region32
      $region31: #{basic_block_forward.5} parent=27 // pred_region
        %vm411 = vcmask 7168
        %412 = vst.msk [vmem:[%s260] sm:$0xff] %vm411, 0.0
        %413 = vst.msk [vmem:[%s260 + $0x8] sm:$0xff] %vm411, 0.0
        %414 = vst.msk [vmem:[%s266] sm:$0xff] %vm411, 0.0
        %415 = vst.msk [vmem:[%s266 + $0x8] sm:$0xff] %vm411, 0.0
      $region32: #{basic_block_forward.5} parent=27 // pred_fallthru
        _
      %v416 = vld [vmem:[%s260] sm:$0xff]
      %v417 = vld [vmem:[%s260 + $0x8] sm:$0xff]
      %418 = vadd.xlane.f32.xlu0 %v391
      %v419 = vpop.xlane.xlu0 %418
      %420 = vadd.xlane.f32.xlu0 %v394
      %v421 = vpop.xlane.xlu0 %420
      %v422 = vadd.f32 %v416, %v419
      %v423 = vadd.f32 %v417, %v421
      %vm424 = vcmask 7168
      %425 = vst.msk [vmem:[%s260] sm:$0xff] %vm424, %v422
      %426 = vst.msk [vmem:[%s260 + $0x8] sm:$0xff] %vm424, %v423
      %v427 = vld [vmem:[%s266] sm:$0xff]
      %v428 = vld [vmem:[%s266 + $0x8] sm:$0xff]
      %v429 = vmul.f32 %v391, %v391
      %v430 = vmul.f32 %v394, %v394
      %431 = vadd.xlane.f32.xlu0 %v429
      %v432 = vpop.xlane.xlu0 %431
      %433 = vadd.xlane.f32.xlu0 %v430
      %v434 = vpop.xlane.xlu0 %433
      %v435 = vadd.f32 %v427, %v432
      %v436 = vadd.f32 %v428, %v434
      %437 = vst.msk [vmem:[%s266] sm:$0xff] %vm424, %v435
      %438 = vst.msk [vmem:[%s266 + $0x8] sm:$0xff] %vm424, %v436
      %s439 = smul.u32 2, %s20
      %p440 = scmp.lt.s32.totalorder %s439, 3
      %s441 = scalar_select %p440, %s439, 3
      %p442 = scmp.lt.s32.totalorder %s21, 0
      %s443 = scalar_select %p442, %s21, 0
      %s444 = sadd.s32 %s443, %s441
      %s445 = smul.addr %s444, 4
      %s446 = scalar_lea.vmem %s2, %s445
      %s447 = smul.u32 2, %s20
      %p448 = scmp.lt.s32.totalorder %s447, 3
      %s449 = scalar_select %p448, %s447, 3
      %s450 = smul.addr %s449, 8
      %s451 = scalar_lea.vmem %s3, %s450
      %s452 = smul.u32 2, %s20
      %p453 = scmp.lt.s32.totalorder %s452, 3
      %s454 = scalar_select %p453, %s452, 3
      %s455 = smul.addr %s454, 8
      %s456 = scalar_lea.vmem %s4, %s455
      // Predicated region
      $region33: #{basic_block_forward.5} parent=27 // pred_check
        %p457 = pneg %p100
      $region34: #{basic_block_forward.5} parent=27 // pred_check_branch
        %459 = sbr.rel (%p457) target = $region36
      $region35: #{basic_block_forward.5} parent=27 // pred_region
        %s460 = smul.u32 2, %s20
      $region36: #{basic_block_forward.5} parent=27 // pred_fallthru
        _
      // Predicated region
      $region37: #{basic_block_forward.5} parent=27 // pred_check
        %p461 = pneg %p126
      $region38: #{basic_block_forward.5} parent=27 // pred_check_branch
        %463 = sbr.rel (%p461) target = $region40
      $region39: #{basic_block_forward.5} parent=27 // pred_region
        %s464 = smul.u32 2, %s20
      $region40: #{basic_block_forward.5} parent=27 // pred_fallthru
        _
      // Predicated region
      $region41: #{basic_block_forward.5} parent=27 // pred_check
        %p465 = pneg %p152
      $region42: #{basic_block_forward.5} parent=27 // pred_check_branch
        %467 = sbr.rel (%p465) target = $region44
      $region43: #{basic_block_forward.5} parent=27 // pred_region
        %s468 = smul.u32 2, %s20
      $region44: #{basic_block_forward.5} parent=27 // pred_fallthru
        _
    $region28: #{basic_block_forward.5} parent=5 // pred_fallthru
      _
    %p469 = scmp.le.s32.totalorder 2, %s11
    // Predicated region
    $region45: #{basic_block_forward.5} parent=5 // pred_check
      %p470 = pneg %p469
    $region46: #{basic_block_forward.5} parent=5 // pred_check_branch
      %472 = sbr.rel (%p470) target = $region48
    $region47: #{basic_block_forward.5} parent=5 // pred_region
      %s473 = ssub.s32 %s11, 2
      // Predicated region
      $region49: #{basic_block_forward.5} parent=47 // pred_check
        %p474 = pneg %p106
      $region50: #{basic_block_forward.5} parent=47 // pred_check_branch
        %476 = sbr.rel (%p474) target = $region52
      $region51: #{basic_block_forward.5} parent=47 // pred_region
        %s477 = smul.u32 2, %s22
        %p478 = scmp.lt.s32.totalorder %s477, 3
        %s479 = scalar_select %p478, %s477, 3
        %p480 = scmp.lt.s32.totalorder %s23, 0
        %s481 = scalar_select %p480, %s23, 0
        %s482 = sadd.s32 %s481, %s479
        %s483 = smul.addr %s482, 4
        %s484 = scalar_lea.vmem %s2, %s483
      $region52: #{basic_block_forward.5} parent=47 // pred_fallthru
        _
      // Predicated region
      $region53: #{basic_block_forward.5} parent=47 // pred_check
        %p485 = pneg %p132
      $region54: #{basic_block_forward.5} parent=47 // pred_check_branch
        %487 = sbr.rel (%p485) target = $region56
      $region55: #{basic_block_forward.5} parent=47 // pred_region
        %s488 = smul.u32 2, %s22
        %p489 = scmp.lt.s32.totalorder %s488, 3
        %s490 = scalar_select %p489, %s488, 3
        %s491 = smul.addr %s490, 8
        %s492 = scalar_lea.vmem %s3, %s491
      $region56: #{basic_block_forward.5} parent=47 // pred_fallthru
        _
      // Predicated region
      $region57: #{basic_block_forward.5} parent=47 // pred_check
        %p493 = pneg %p158
      $region58: #{basic_block_forward.5} parent=47 // pred_check_branch
        %495 = sbr.rel (%p493) target = $region60
      $region59: #{basic_block_forward.5} parent=47 // pred_region
        %s496 = smul.u32 2, %s22
        %p497 = scmp.lt.s32.totalorder %s496, 3
        %s498 = scalar_select %p497, %s496, 3
        %s499 = smul.addr %s498, 8
        %s500 = scalar_lea.vmem %s4, %s499
      $region60: #{basic_block_forward.5} parent=47 // pred_fallthru
        _
    $region48: #{basic_block_forward.5} parent=5 // pred_fallthru
      _
  $region6: #{basic_block_forward.5} parent=0 // loop_footer
    %s15 = sadd.s32 1, %s11
  $region7: #{basic_block_forward.5} parent=0 // loop_footer_branch
    %10 = sbr.rel target = $region3
  $region8: #{basic_block_forward.5} parent=0 // loop_exit
    _

// kernel: basic_block_forward.6
$region0: #{basic_block_forward.6}
  #allocation0 [shape = 'u32[]', space=smem, size = 0x4, offset = 0x4, fixed_abs, tag = 'smem constant byte address 0x4 - core index']
  #allocation1 [shape = 'u32[144,128]{1,0:T(1,128)}', space=vmem, size = 0x12000, scoped, tag = 'internal scratch']
  %s0 = inlined_call_operand.vmem [shape: bf16[32,128], index: 0, kind: input, shape index: {}]
  %s1 = inlined_call_operand.vmem [shape: f32[32,1], index: 1, kind: input, shape index: {}]
  %s2 = inlined_call_operand.vmem [shape: f32[32,1], index: 2, kind: input, shape index: {}]
  %s3 = inlined_call_operand.vmem [shape: bf16[32,128], index: 3, kind: output, shape index: {}]
  %s4 = sld [smem:[#allocation0]]
  $region22: #{basic_block_forward.6} parent=0
    _
  %s6 = ssub.s32 1, %s4
  %s7 = scalar_select 0, %s6, %s4
  // Predicated region
  $region2: #{basic_block_forward.6} parent=0 // pred_check
    _
  $region3: #{basic_block_forward.6} parent=0 // pred_check_branch
    %9 = sbr.rel (0) target = $region5
  $region4: #{basic_block_forward.6} parent=0 // pred_region
    _
  $region5: #{basic_block_forward.6} parent=0 // pred_fallthru
    _
  // Predicated region
  $region6: #{basic_block_forward.6} parent=0 // pred_check
    _
  $region7: #{basic_block_forward.6} parent=0 // pred_check_branch
    %11 = sbr.rel (0) target = $region9
  $region8: #{basic_block_forward.6} parent=0 // pred_region
    _
  $region9: #{basic_block_forward.6} parent=0 // pred_fallthru
    _
  // Predicated region
  $region10: #{basic_block_forward.6} parent=0 // pred_check
    _
  $region11: #{basic_block_forward.6} parent=0 // pred_check_branch
    %13 = sbr.rel (0) target = $region13
  $region12: #{basic_block_forward.6} parent=0 // pred_region
    _
  $region13: #{basic_block_forward.6} parent=0 // pred_fallthru
    _
  %v14 = vld [vmem:[%s0] sm:$0xf]
  %v15 = vld [vmem:[%s0 + $0x4] sm:$0xf]
  %v16 = vld [vmem:[%s0 + $0x8] sm:$0xf]
  %v17 = vld [vmem:[%s0 + $0xc] sm:$0xf]
  %v18 = vunpack.c.l.bf16 %v14
  %v19 = vunpack.c.l.bf16 %v15
  %v20 = vunpack.c.l.bf16 %v16
  %v21 = vunpack.c.l.bf16 %v17
  %v22 = vld [vmem:[%s1] sm:$0xff]
  %v23 = vld [vmem:[%s1 + $0x8] sm:$0xff]
  %v24 = vld [vmem:[%s1 + $0x10] sm:$0xff]
  %v25 = vld [vmem:[%s1 + $0x18] sm:$0xff]
  %27 = vset.pattern.permute.xlu0 0
  %28 = vperm.xlu0 %27, %v22
  %v29 = vpop.permute.xlu0 %28
  %32 = vset.pattern.permute.xlu0 0
  %33 = vperm.xlu0 %32, %v23
  %v34 = vpop.permute.xlu0 %33
  %37 = vset.pattern.permute.xlu0 0
  %38 = vperm.xlu0 %37, %v24
  %v39 = vpop.permute.xlu0 %38
  %42 = vset.pattern.permute.xlu0 0
  %43 = vperm.xlu0 %42, %v25
  %v44 = vpop.permute.xlu0 %43
  %v46 = vmul.f32 %v18, %v29
  %v47 = vmul.f32 %v19, %v34
  %v48 = vmul.f32 %v20, %v39
  %v49 = vmul.f32 %v21, %v44
  %v50 = vld [vmem:[%s2] sm:$0xff]
  %v51 = vld [vmem:[%s2 + $0x8] sm:$0xff]
  %v52 = vld [vmem:[%s2 + $0x10] sm:$0xff]
  %v53 = vld [vmem:[%s2 + $0x18] sm:$0xff]
  %55 = vset.pattern.permute.xlu0 0
  %56 = vperm.xlu0 %55, %v50
  %v57 = vpop.permute.xlu0 %56
  %60 = vset.pattern.permute.xlu0 0
  %61 = vperm.xlu0 %60, %v51
  %v62 = vpop.permute.xlu0 %61
  %65 = vset.pattern.permute.xlu0 0
  %66 = vperm.xlu0 %65, %v52
  %v67 = vpop.permute.xlu0 %66
  %70 = vset.pattern.permute.xlu0 0
  %71 = vperm.xlu0 %70, %v53
  %v72 = vpop.permute.xlu0 %71
  %v74 = vadd.f32 %v46, %v57
  %v75 = vadd.f32 %v47, %v62
  %v76 = vadd.f32 %v48, %v67
  %v77 = vadd.f32 %v49, %v72
  %v78 = vmax.f32 %v74, 0.0
  %v79 = vmax.f32 %v75, 0.0
  %v80 = vmax.f32 %v76, 0.0
  %v81 = vmax.f32 %v77, 0.0
  %v82 = vpack.c.bf16 %v79, %v78
  %v83 = vpack.c.bf16 %v81, %v80
  %v86 = vunpack.c.l.b16 %v82
  %v87 = vunpack.c.h.b16 %v82
  %v88 = vunpack.c.l.b16 %v83
  %v89 = vunpack.c.h.b16 %v83
  %v90 = vpack.c.b16 %v86, %v86
  %v91 = vpack.c.b16 %v87, %v87
  %v92 = vpack.c.b16 %v88, %v88
  %v93 = vpack.c.b16 %v89, %v89
  %98 = vst [vmem:[%s3] sm:$0xf] %v90
  %99 = vst [vmem:[%s3 + $0x4] sm:$0xf] %v91
  %100 = vst [vmem:[%s3 + $0x8] sm:$0xf] %v92
  %101 = vst [vmem:[%s3 + $0xc] sm:$0xf] %v93
  // Predicated region
  $region14: #{basic_block_forward.6} parent=0 // pred_check
    _
  $region15: #{basic_block_forward.6} parent=0 // pred_check_branch
    %103 = sbr.rel (0) target = $region17
  $region16: #{basic_block_forward.6} parent=0 // pred_region
    _
  $region17: #{basic_block_forward.6} parent=0 // pred_fallthru
    _
  // Predicated region
  $region18: #{basic_block_forward.6} parent=0 // pred_check
    _
  $region19: #{basic_block_forward.6} parent=0 // pred_check_branch
    %105 = sbr.rel (0) target = $region21
  $region20: #{basic_block_forward.6} parent=0 // pred_region
    _
  $region21: #{basic_block_forward.6} parent=0 // pred_fallthru
    _

// kernel: basic_block_forward.9
$region0: #{basic_block_forward.9}
  #allocation0 [shape = 'u32[]', space=smem, size = 0x4, offset = 0x4, fixed_abs, tag = 'smem constant byte address 0x4 - core index']
  #allocation1 [shape = 'u32[144,128]{1,0:T(1,128)}', space=vmem, size = 0x12000, scoped, tag = 'internal scratch']
  %s0 = inlined_call_operand.vmem [shape: bf16[32,128], index: 0, kind: input, shape index: {}]
  %s1 = inlined_call_operand.vmem [shape: f32[32,1], index: 1, kind: input, shape index: {}]
  %s2 = inlined_call_operand.vmem [shape: f32[32,1], index: 2, kind: input, shape index: {}]
  %s3 = inlined_call_operand.vmem [shape: bf16[32,128], index: 3, kind: input, shape index: {}]
  %s4 = inlined_call_operand.vmem [shape: f32[32,1], index: 4, kind: input, shape index: {}]
  %s5 = inlined_call_operand.vmem [shape: f32[32,1], index: 5, kind: input, shape index: {}]
  %s6 = inlined_call_operand.vmem [shape: f32[32,128], index: 6, kind: output, shape index: {}]
  %s7 = sld [smem:[#allocation0]]
  $region34: #{basic_block_forward.9} parent=0
    _
  %s9 = ssub.s32 1, %s7
  %s10 = scalar_select 0, %s9, %s7
  // Predicated region
  $region2: #{basic_block_forward.9} parent=0 // pred_check
    _
  $region3: #{basic_block_forward.9} parent=0 // pred_check_branch
    %12 = sbr.rel (0) target = $region5
  $region4: #{basic_block_forward.9} parent=0 // pred_region
    _
  $region5: #{basic_block_forward.9} parent=0 // pred_fallthru
    _
  // Predicated region
  $region6: #{basic_block_forward.9} parent=0 // pred_check
    _
  $region7: #{basic_block_forward.9} parent=0 // pred_check_branch
    %14 = sbr.rel (0) target = $region9
  $region8: #{basic_block_forward.9} parent=0 // pred_region
    _
  $region9: #{basic_block_forward.9} parent=0 // pred_fallthru
    _
  // Predicated region
  $region10: #{basic_block_forward.9} parent=0 // pred_check
    _
  $region11: #{basic_block_forward.9} parent=0 // pred_check_branch
    %16 = sbr.rel (0) target = $region13
  $region12: #{basic_block_forward.9} parent=0 // pred_region
    _
  $region13: #{basic_block_forward.9} parent=0 // pred_fallthru
    _
  // Predicated region
  $region14: #{basic_block_forward.9} parent=0 // pred_check
    _
  $region15: #{basic_block_forward.9} parent=0 // pred_check_branch
    %18 = sbr.rel (0) target = $region17
  $region16: #{basic_block_forward.9} parent=0 // pred_region
    _
  $region17: #{basic_block_forward.9} parent=0 // pred_fallthru
    _
  // Predicated region
  $region18: #{basic_block_forward.9} parent=0 // pred_check
    _
  $region19: #{basic_block_forward.9} parent=0 // pred_check_branch
    %20 = sbr.rel (0) target = $region21
  $region20: #{basic_block_forward.9} parent=0 // pred_region
    _
  $region21: #{basic_block_forward.9} parent=0 // pred_fallthru
    _
  // Predicated region
  $region22: #{basic_block_forward.9} parent=0 // pred_check
    _
  $region23: #{basic_block_forward.9} parent=0 // pred_check_branch
    %22 = sbr.rel (0) target = $region25
  $region24: #{basic_block_forward.9} parent=0 // pred_region
    _
  $region25: #{basic_block_forward.9} parent=0 // pred_fallthru
    _
  %v23 = vld [vmem:[%s0] sm:$0xf]
  %v24 = vld [vmem:[%s0 + $0x4] sm:$0xf]
  %v25 = vld [vmem:[%s0 + $0x8] sm:$0xf]
  %v26 = vld [vmem:[%s0 + $0xc] sm:$0xf]
  %v27 = vunpack.c.l.bf16 %v23
  %v28 = vunpack.c.l.bf16 %v24
  %v29 = vunpack.c.l.bf16 %v25
  %v30 = vunpack.c.l.bf16 %v26
  %v31 = vld [vmem:[%s1] sm:$0xff]
  %v32 = vld [vmem:[%s1 + $0x8] sm:$0xff]
  %v33 = vld [vmem:[%s1 + $0x10] sm:$0xff]
  %v34 = vld [vmem:[%s1 + $0x18] sm:$0xff]
  %36 = vset.pattern.permute.xlu0 0
  %37 = vperm.xlu0 %36, %v31
  %v38 = vpop.permute.xlu0 %37
  %41 = vset.pattern.permute.xlu0 0
  %42 = vperm.xlu0 %41, %v32
  %v43 = vpop.permute.xlu0 %42
  %46 = vset.pattern.permute.xlu0 0
  %47 = vperm.xlu0 %46, %v33
  %v48 = vpop.permute.xlu0 %47
  %51 = vset.pattern.permute.xlu0 0
  %52 = vperm.xlu0 %51, %v34
  %v53 = vpop.permute.xlu0 %52
  %v55 = vmul.f32 %v27, %v38
  %v56 = vmul.f32 %v28, %v43
  %v57 = vmul.f32 %v29, %v48
  %v58 = vmul.f32 %v30, %v53
  %v59 = vld [vmem:[%s2] sm:$0xff]
  %v60 = vld [vmem:[%s2 + $0x8] sm:$0xff]
  %v61 = vld [vmem:[%s2 + $0x10] sm:$0xff]
  %v62 = vld [vmem:[%s2 + $0x18] sm:$0xff]
  %64 = vset.pattern.permute.xlu0 0
  %65 = vperm.xlu0 %64, %v59
  %v66 = vpop.permute.xlu0 %65
  %69 = vset.pattern.permute.xlu0 0
  %70 = vperm.xlu0 %69, %v60
  %v71 = vpop.permute.xlu0 %70
  %74 = vset.pattern.permute.xlu0 0
  %75 = vperm.xlu0 %74, %v61
  %v76 = vpop.permute.xlu0 %75
  %79 = vset.pattern.permute.xlu0 0
  %80 = vperm.xlu0 %79, %v62
  %v81 = vpop.permute.xlu0 %80
  %v83 = vadd.f32 %v55, %v66
  %v84 = vadd.f32 %v56, %v71
  %v85 = vadd.f32 %v57, %v76
  %v86 = vadd.f32 %v58, %v81
  %v87 = vld [vmem:[%s3] sm:$0xf]
  %v88 = vld [vmem:[%s3 + $0x4] sm:$0xf]
  %v89 = vld [vmem:[%s3 + $0x8] sm:$0xf]
  %v90 = vld [vmem:[%s3 + $0xc] sm:$0xf]
  %v91 = vunpack.c.l.bf16 %v87
  %v92 = vunpack.c.l.bf16 %v88
  %v93 = vunpack.c.l.bf16 %v89
  %v94 = vunpack.c.l.bf16 %v90
  %v95 = vld [vmem:[%s4] sm:$0xff]
  %v96 = vld [vmem:[%s4 + $0x8] sm:$0xff]
  %v97 = vld [vmem:[%s4 + $0x10] sm:$0xff]
  %v98 = vld [vmem:[%s4 + $0x18] sm:$0xff]
  %100 = vset.pattern.permute.xlu0 0
  %101 = vperm.xlu0 %100, %v95
  %v102 = vpop.permute.xlu0 %101
  %105 = vset.pattern.permute.xlu0 0
  %106 = vperm.xlu0 %105, %v96
  %v107 = vpop.permute.xlu0 %106
  %110 = vset.pattern.permute.xlu0 0
  %111 = vperm.xlu0 %110, %v97
  %v112 = vpop.permute.xlu0 %111
  %115 = vset.pattern.permute.xlu0 0
  %116 = vperm.xlu0 %115, %v98
  %v117 = vpop.permute.xlu0 %116
  %v119 = vmul.f32 %v91, %v102
  %v120 = vmul.f32 %v92, %v107
  %v121 = vmul.f32 %v93, %v112
  %v122 = vmul.f32 %v94, %v117
  %v123 = vadd.f32 %v83, %v119
  %v124 = vadd.f32 %v84, %v120
  %v125 = vadd.f32 %v85, %v121
  %v126 = vadd.f32 %v86, %v122
  %v127 = vld [vmem:[%s5] sm:$0xff]
  %v128 = vld [vmem:[%s5 + $0x8] sm:$0xff]
  %v129 = vld [vmem:[%s5 + $0x10] sm:$0xff]
  %v130 = vld [vmem:[%s5 + $0x18] sm:$0xff]
  %132 = vset.pattern.permute.xlu0 0
  %133 = vperm.xlu0 %132, %v127
  %v134 = vpop.permute.xlu0 %133
  %137 = vset.pattern.permute.xlu0 0
  %138 = vperm.xlu0 %137, %v128
  %v139 = vpop.permute.xlu0 %138
  %142 = vset.pattern.permute.xlu0 0
  %143 = vperm.xlu0 %142, %v129
  %v144 = vpop.permute.xlu0 %143
  %147 = vset.pattern.permute.xlu0 0
  %148 = vperm.xlu0 %147, %v130
  %v149 = vpop.permute.xlu0 %148
  %v151 = vadd.f32 %v123, %v134
  %v152 = vadd.f32 %v124, %v139
  %v153 = vadd.f32 %v125, %v144
  %v154 = vadd.f32 %v126, %v149
  %v155 = vmax.f32 %v151, 0.0
  %v156 = vmax.f32 %v152, 0.0
  %v157 = vmax.f32 %v153, 0.0
  %v158 = vmax.f32 %v154, 0.0
  %159 = vst [vmem:[%s6] sm:$0xff] %v155
  %160 = vst [vmem:[%s6 + $0x8] sm:$0xff] %v156
  %161 = vst [vmem:[%s6 + $0x10] sm:$0xff] %v157
  %162 = vst [vmem:[%s6 + $0x18] sm:$0xff] %v158
  // Predicated region
  $region26: #{basic_block_forward.9} parent=0 // pred_check
    _
  $region27: #{basic_block_forward.9} parent=0 // pred_check_branch
    %164 = sbr.rel (0) target = $region29
  $region28: #{basic_block_forward.9} parent=0 // pred_region
    _
  $region29: #{basic_block_forward.9} parent=0 // pred_fallthru
    _
  // Predicated region
  $region30: #{basic_block_forward.9} parent=0 // pred_check
    _
  $region31: #{basic_block_forward.9} parent=0 // pred_check_branch
    %166 = sbr.rel (0) target = $region33
  $region32: #{basic_block_forward.9} parent=0 // pred_region
    _
  $region33: #{basic_block_forward.9} parent=0 // pred_fallthru
    _

// kernel: basic_block_forward.7
$region0: #{basic_block_forward.7}
  #allocation0 [shape = 'u32[]', space=smem, size = 0x4, offset = 0x4, fixed_abs, tag = 'smem constant byte address 0x4 - core index']
  #allocation1 [shape = 'u32[144,128]{1,0:T(1,128)}', space=vmem, size = 0x12000, scoped, tag = 'internal scratch']
  %s0 = inlined_call_operand.vmem [shape: bf16[32,288], index: 0, kind: input, shape index: {}]
  %s1 = inlined_call_operand.vmem [shape: bf16[288,128], index: 1, kind: input, shape index: {}]
  %s2 = inlined_call_operand.vmem [shape: bf16[32,128], index: 2, kind: output, shape index: {0}]
  %s3 = inlined_call_operand.vmem [shape: f32[32,1], index: 3, kind: output, shape index: {1}]
  %s4 = inlined_call_operand.vmem [shape: f32[32,1], index: 4, kind: output, shape index: {2}]
  %5 = xla_tuple %s2, %s3, %s4
  %s6 = sld [smem:[#allocation0]]
  $region61: #{basic_block_forward.7} parent=0
    _
  %s8 = ssub.s32 1, %s6
  %s9 = scalar_select 0, %s8, %s6
  loop: start=0, step=1, limit=4
  $region2: #{basic_block_forward.7} parent=0 // loop_pre_header
    _
  $region3: #{basic_block_forward.7} parent=0 // loop_header
    %s11 = sphi 0, %s15
    %p12 = scmp.ge.s32.totalorder %s11, 4
    %s18 = sphi 0, %s30
    %s19 = sphi 0, %s26
    %s20 = sphi 0, %s18
    %s21 = sphi 0, %s19
    %s22 = sphi 0, %s20
    %s23 = sphi 0, %s21
    %s33 = sphi 0, %s35
    %s36 = sphi 0, %s33
    %s37 = sphi 0, %s36
    %s53 = sphi 0, %s37
    %s59 = sphi 0, %s61
    %s62 = sphi 0, %s59
    %s63 = sphi 0, %s62
    %s79 = sphi 0, %s63
    %s87 = sphi 0, %s89
    %s90 = sphi 0, %s87
    %s91 = sphi 0, %s90
    %s107 = sphi 0, %s91
    %s113 = sphi 0, %s115
    %s116 = sphi 0, %s113
    %s117 = sphi 0, %s116
    %s133 = sphi 0, %s117
    %s139 = sphi 0, %s141
    %s142 = sphi 0, %s139
    %s143 = sphi 0, %s142
    %s159 = sphi 0, %s143
  $region4: #{basic_block_forward.7} parent=0 // loop_header_branch
    %14 = sbr.rel (%p12) target = $region8
  $region5: #{basic_block_forward.7} parent=0 // loop_body
    %s16 = ssub.s32 %s11, 1
    %s17 = ssub.s32 %s11, 2
    %s24 = sadd.s32 1, %s19
    %p25 = scmp.ge.s32.totalorder %s24, 1
    %s26 = scalar_select %p25, 0, %s24
    %s27 = sadd.s32 1, %s18
    %s28 = scalar_select %p25, %s27, %s18
    %p29 = scmp.ge.s32.totalorder %s28, 2
    %s30 = scalar_select %p29, 0, %s28
    %s31 = ssub.s32 %s18, %s30
    %p32 = scmp.eq.s32.totalorder %s31, 0
    %s34 = sadd.s32 %s33, 1
    %s35 = scalar_select %p32, %s33, %s34
    %p38 = pneg %p32
    %p39 = scmp.eq.s32.totalorder %s11, 1
    %p40 = por %p38, %p39
    %p41 = scmp.ne.s32.totalorder %s33, %s36
    %p42 = scmp.eq.s32.totalorder %s11, 0
    %p43 = por %p41, %p42
    %p44 = scmp.ne.s32.totalorder %s33, %s36
    %p45 = scmp.eq.s32.totalorder %s16, 1
    %p46 = por %p44, %p45
    %p47 = scmp.ne.s32.totalorder %s36, %s37
    %p48 = scmp.eq.s32.totalorder %s16, 0
    %p49 = por %p47, %p48
    %p50 = scmp.ne.s32.totalorder %s36, %s37
    %p51 = scmp.eq.s32.totalorder %s17, 1
    %p52 = por %p50, %p51
    %p54 = scmp.ne.s32.totalorder %s37, %s53
    %p55 = scmp.eq.s32.totalorder %s17, 0
    %p56 = por %p54, %p55
    %s57 = ssub.s32 %s19, %s26
    %p58 = scmp.eq.s32.totalorder %s57, 0
    %s60 = sadd.s32 %s59, 1
    %s61 = scalar_select %p58, %s59, %s60
    %p64 = pneg %p58
    %p65 = scmp.eq.s32.totalorder %s11, 1
    %p66 = por %p64, %p65
    %p67 = scmp.ne.s32.totalorder %s59, %s62
    %p68 = scmp.eq.s32.totalorder %s11, 0
    %p69 = por %p67, %p68
    %p70 = scmp.ne.s32.totalorder %s59, %s62
    %p71 = scmp.eq.s32.totalorder %s16, 1
    %p72 = por %p70, %p71
    %p73 = scmp.ne.s32.totalorder %s62, %s63
    %p74 = scmp.eq.s32.totalorder %s16, 0
    %p75 = por %p73, %p74
    %p76 = scmp.ne.s32.totalorder %s62, %s63
    %p77 = scmp.eq.s32.totalorder %s17, 1
    %p78 = por %p76, %p77
    %p80 = scmp.ne.s32.totalorder %s63, %s79
    %p81 = scmp.eq.s32.totalorder %s17, 0
    %p82 = por %p80, %p81
    %s83 = ssub.s32 %s18, %s30
    %s84 = ssub.s32 %s19, %s26
    %s85 = sor.u32 %s83, %s84
    %p86 = scmp.eq.s32.totalorder %s85, 0
    %s88 = sadd.s32 %s87, 1
    %s89 = scalar_select %p86, %s87, %s88
    %p92 = pneg %p86
    %p93 = scmp.eq.s32.totalorder %s11, 1
    %p94 = por %p92, %p93
    %p95 = scmp.ne.s32.totalorder %s87, %s90
    %p96 = scmp.eq.s32.totalorder %s11, 0
    %p97 = por %p95, %p96
    %p98 = scmp.ne.s32.totalorder %s87, %s90
    %p99 = scmp.eq.s32.totalorder %s16, 1
    %p100 = por %p98, %p99
    %p101 = scmp.ne.s32.totalorder %s90, %s91
    %p102 = scmp.eq.s32.totalorder %s16, 0
    %p103 = por %p101, %p102
    %p104 = scmp.ne.s32.totalorder %s90, %s91
    %p105 = scmp.eq.s32.totalorder %s17, 1
    %p106 = por %p104, %p105
    %p108 = scmp.ne.s32.totalorder %s91, %s107
    %p109 = scmp.eq.s32.totalorder %s17, 0
    %p110 = por %p108, %p109
    %s111 = ssub.s32 %s18, %s30
    %p112 = scmp.eq.s32.totalorder %s111, 0
    %s114 = sadd.s32 %s113, 1
    %s115 = scalar_select %p112, %s113, %s114
    %p118 = pneg %p112
    %p119 = scmp.eq.s32.totalorder %s11, 1
    %p120 = por %p118, %p119
    %p121 = scmp.ne.s32.totalorder %s113, %s116
    %p122 = scmp.eq.s32.totalorder %s11, 0
    %p123 = por %p121, %p122
    %p124 = scmp.ne.s32.totalorder %s113, %s116
    %p125 = scmp.eq.s32.totalorder %s16, 1
    %p126 = por %p124, %p125
    %p127 = scmp.ne.s32.totalorder %s116, %s117
    %p128 = scmp.eq.s32.totalorder %s16, 0
    %p129 = por %p127, %p128
    %p130 = scmp.ne.s32.totalorder %s116, %s117
    %p131 = scmp.eq.s32.totalorder %s17, 1
    %p132 = por %p130, %p131
    %p134 = scmp.ne.s32.totalorder %s117, %s133
    %p135 = scmp.eq.s32.totalorder %s17, 0
    %p136 = por %p134, %p135
    %s137 = ssub.s32 %s18, %s30
    %p138 = scmp.eq.s32.totalorder %s137, 0
    %s140 = sadd.s32 %s139, 1
    %s141 = scalar_select %p138, %s139, %s140
    %p144 = pneg %p138
    %p145 = scmp.eq.s32.totalorder %s11, 1
    %p146 = por %p144, %p145
    %p147 = scmp.ne.s32.totalorder %s139, %s142
    %p148 = scmp.eq.s32.totalorder %s11, 0
    %p149 = por %p147, %p148
    %p150 = scmp.ne.s32.totalorder %s139, %s142
    %p151 = scmp.eq.s32.totalorder %s16, 1
    %p152 = por %p150, %p151
    %p153 = scmp.ne.s32.totalorder %s142, %s143
    %p154 = scmp.eq.s32.totalorder %s16, 0
    %p155 = por %p153, %p154
    %p156 = scmp.ne.s32.totalorder %s142, %s143
    %p157 = scmp.eq.s32.totalorder %s17, 1
    %p158 = por %p156, %p157
    %p160 = scmp.ne.s32.totalorder %s143, %s159
    %p161 = scmp.eq.s32.totalorder %s17, 0
    %p162 = por %p160, %p161
    %p163 = scmp.le.s32.totalorder 1, %s11
    %p164 = scmp.lt.s32.totalorder %s11, 3
    %p165 = pnand %p163, %p164
    %p166 = pneg %p165
    // Predicated region
    $region9: #{basic_block_forward.7} parent=5 // pred_check
      _
    $region10: #{basic_block_forward.7} parent=5 // pred_check_branch
      %168 = sbr.rel (%p165) target = $region12
    $region11: #{basic_block_forward.7} parent=5 // pred_region
      %s169 = ssub.s32 %s11, 1
      // Predicated region
      $region13: #{basic_block_forward.7} parent=11 // pred_check
        %p170 = pneg %p75
      $region14: #{basic_block_forward.7} parent=11 // pred_check_branch
        %172 = sbr.rel (%p170) target = $region16
      $region15: #{basic_block_forward.7} parent=11 // pred_region
        %p173 = scmp.lt.s32.totalorder %s21, 0
        %s174 = scalar_select %p173, %s21, 0
        %s175 = smul.addr %s174, 4
        %s176 = scalar_lea.vmem %s1, %s175
      $region16: #{basic_block_forward.7} parent=11 // pred_fallthru
        _
    $region12: #{basic_block_forward.7} parent=5 // pred_fallthru
      _
    %p177 = scmp.lt.s32.totalorder %s11, 2
    // Predicated region
    $region17: #{basic_block_forward.7} parent=5 // pred_check
      %p178 = pneg %p177
    $region18: #{basic_block_forward.7} parent=5 // pred_check_branch
      %180 = sbr.rel (%p178) target = $region20
    $region19: #{basic_block_forward.7} parent=5 // pred_region
      // Predicated region
      $region21: #{basic_block_forward.7} parent=19 // pred_check
        %p181 = pneg %p43
      $region22: #{basic_block_forward.7} parent=19 // pred_check_branch
        %183 = sbr.rel (%p181) target = $region24
      $region23: #{basic_block_forward.7} parent=19 // pred_region
        %s184 = smul.u32 2, %s18
        %p185 = scmp.lt.s32.totalorder %s184, 3
        %s186 = scalar_select %p185, %s184, 3
        %s187 = smul.addr %s186, 3
        %s188 = smul.addr %s187, 4
        %s189 = scalar_lea.vmem %s0, %s188
        %s190 = smul.u32 2, %s18
      $region24: #{basic_block_forward.7} parent=19 // pred_fallthru
        _
    $region20: #{basic_block_forward.7} parent=5 // pred_fallthru
      _
    %p191 = scmp.le.s32.totalorder 1, %s11
    %p192 = scmp.lt.s32.totalorder %s11, 3
    %p193 = pnand %p191, %p192
    %p194 = pneg %p193
    // Predicated region
    $region25: #{basic_block_forward.7} parent=5 // pred_check
      _
    $region26: #{basic_block_forward.7} parent=5 // pred_check_branch
      %196 = sbr.rel (%p193) target = $region28
    $region27: #{basic_block_forward.7} parent=5 // pred_region
      %s197 = ssub.s32 %s11, 1
      %s198 = smul.u32 2, %s20
      %p199 = scmp.lt.s32.totalorder %s198, 3
      %s200 = scalar_select %p199, %s198, 3
      %s201 = smul.addr %s200, 3
      %s202 = smul.addr %s201, 4
      %s203 = scalar_lea.vmem %s0, %s202
      %p204 = pneg %p49
      %p205 = pneg %p46
      %p206 = scmp.lt.s32.totalorder %s21, 0
      %s207 = scalar_select %p206, %s21, 0
      %s208 = smul.addr %s207, 4
      %s209 = scalar_lea.vmem %s1, %s208
      %p210 = pneg %p75
      %p211 = pneg %p72
      %p212 = pneg %p103
      %p213 = pneg %p100
      %s214 = smul.u32 2, %s20
      %p215 = scmp.lt.s32.totalorder %s214, 3
      %s216 = scalar_select %p215, %s214, 3
      %p217 = scmp.lt.s32.totalorder %s21, 0
      %s218 = scalar_select %p217, %s21, 0
      %s219 = sadd.s32 %s218, %s216
      %s220 = smul.addr %s219, 4
      %s221 = scalar_lea.vmem %s2, %s220
      %p222 = pneg %p129
      %p223 = pneg %p126
      %s224 = smul.u32 2, %s20
      %p225 = scmp.lt.s32.totalorder %s224, 3
      %s226 = scalar_select %p225, %s224, 3
      %s227 = smul.addr %s226, 8
      %s228 = scalar_lea.vmem %s3, %s227
      %p229 = pneg %p155
      %p230 = pneg %p152
      %s231 = smul.u32 2, %s20
      %p232 = scmp.lt.s32.totalorder %s231, 3
      %s233 = scalar_select %p232, %s231, 3
      %s234 = smul.addr %s233, 8
      %s235 = scalar_lea.vmem %s4, %s234
      %s236 = smul.u32 2, %s20
      %p237 = scmp.lt.s32.totalorder %s236, 3
      %s238 = scalar_select %p237, %s236, 3
      %s239 = smul.addr %s238, 3
      %s240 = smul.addr %s239, 4
      %s241 = scalar_lea.vmem %s0, %s240
      %s242 = smul.u32 2, %s20
      %p243 = scmp.lt.s32.totalorder %s21, 0
      %s244 = scalar_select %p243, %s21, 0
      %s245 = smul.addr %s244, 4
      %s246 = scalar_lea.vmem %s1, %s245
      %s247 = smul.u32 2, %s20
      %p248 = scmp.lt.s32.totalorder %s247, 3
      %s249 = scalar_select %p248, %s247, 3
      %p250 = scmp.lt.s32.totalorder %s21, 0
      %s251 = scalar_select %p250, %s21, 0
      %s252 = sadd.s32 %s251, %s249
      %s253 = smul.addr %s252, 4
      %s254 = scalar_lea.vmem %s2, %s253
      %s255 = smul.u32 2, %s20
      %s256 = smul.u32 2, %s20
      %p257 = scmp.lt.s32.totalorder %s256, 3
      %s258 = scalar_select %p257, %s256, 3
      %s259 = smul.addr %s258, 8
      %s260 = scalar_lea.vmem %s3, %s259
      %s261 = smul.u32 2, %s20
      %s262 = smul.u32 2, %s20
      %p263 = scmp.lt.s32.totalorder %s262, 3
      %s264 = scalar_select %p263, %s262, 3
      %s265 = smul.addr %s264, 8
      %s266 = scalar_lea.vmem %s4, %s265
      %s267 = smul.u32 2, %s20
      %v269 = vld [vmem:[%s241] sm:$0xff]
      %v270 = vld [vmem:[%s241 + $0x8] sm:$0xf]
      %v271 = vld [vmem:[%s241 + $0xc] sm:$0xff]
      %v272 = vld [vmem:[%s241 + $0x14] sm:$0xf]
      %v273 = vld [vmem:[%s246] sm:$0xf]
      %v274 = vld [vmem:[%s246 + $0x4] sm:$0xf]
      %v275 = vld [vmem:[%s246 + $0x8] sm:$0xf]
      %v276 = vld [vmem:[%s246 + $0xc] sm:$0xf]
      %v277 = vld [vmem:[%s246 + $0x10] sm:$0xf]
      %v278 = vld [vmem:[%s246 + $0x14] sm:$0xf]
      %v279 = vld [vmem:[%s246 + $0x18] sm:$0xf]
      %v280 = vld [vmem:[%s246 + $0x1c] sm:$0xf]
      %v281 = vld [vmem:[%s246 + $0x20] sm:$0xf]
      %v282 = vld [vmem:[%s246 + $0x24] sm:$0xf]
      %v283 = vld [vmem:[%s246 + $0x28] sm:$0xf]
      %v284 = vld [vmem:[%s246 + $0x2c] sm:$0xf]
      %v285 = vld [vmem:[%s246 + $0x30] sm:$0xf]
      %v286 = vld [vmem:[%s246 + $0x34] sm:$0xf]
      %v287 = vld [vmem:[%s246 + $0x38] sm:$0xf]
      %v288 = vld [vmem:[%s246 + $0x3c] sm:$0xf]
      %v289 = vld [vmem:[%s246 + $0x40] sm:$0xf]
      %v290 = vld [vmem:[%s246 + $0x44] sm:$0xf]
      %v291 = vld [vmem:[%s246 + $0x48] sm:$0xf]
      %v292 = vld [vmem:[%s246 + $0x4c] sm:$0xf]
      %v293 = vld [vmem:[%s246 + $0x50] sm:$0xf]
      %v294 = vld [vmem:[%s246 + $0x54] sm:$0xf]
      %v295 = vld [vmem:[%s246 + $0x58] sm:$0xf]
      %v296 = vld [vmem:[%s246 + $0x5c] sm:$0xf]
      %v297 = vld [vmem:[%s246 + $0x60] sm:$0xf]
      %v298 = vld [vmem:[%s246 + $0x64] sm:$0xf]
      %v299 = vld [vmem:[%s246 + $0x68] sm:$0xf]
      %v300 = vld [vmem:[%s246 + $0x6c] sm:$0xf]
      %v301 = vld [vmem:[%s246 + $0x70] sm:$0xf]
      %v302 = vld [vmem:[%s246 + $0x74] sm:$0xf]
      %v303 = vld [vmem:[%s246 + $0x78] sm:$0xf]
      %v304 = vld [vmem:[%s246 + $0x7c] sm:$0xf]
      %v305 = vld [vmem:[%s246 + $0x80] sm:$0xf]
      %v306 = vld [vmem:[%s246 + $0x84] sm:$0xf]
      %v307 = vld [vmem:[%s246 + $0x88] sm:$0xf]
      %v308 = vld [vmem:[%s246 + $0x8c] sm:$0xf]
      %v313 = vunpack.c.l.b16 %v269
      %v314 = vunpack.c.h.b16 %v269
      %v315 = vunpack.c.l.b16 %v270
      %v316 = vunpack.c.l.b16 %v271
      %v317 = vunpack.c.h.b16 %v271
      %v318 = vunpack.c.l.b16 %v272
      %v319 = vpack.c.b16 %v316, %v313
      %v320 = vpack.c.b16 %v317, %v314
      %v321 = vpack.c.b16 %v318, %v315
      %v360 = vunpack.c.l.b16 %v273
      %v361 = vunpack.c.l.b16 %v274
      %v362 = vunpack.c.l.b16 %v275
      %v363 = vunpack.c.l.b16 %v276
      %v364 = vunpack.c.l.b16 %v277
      %v365 = vunpack.c.l.b16 %v278
      %v366 = vunpack.c.l.b16 %v279
      %v367 = vunpack.c.l.b16 %v280
      %v368 = vunpack.c.l.b16 %v281
      %v369 = vunpack.c.l.b16 %v282
      %v370 = vunpack.c.l.b16 %v283
      %v371 = vunpack.c.l.b16 %v284
      %v372 = vunpack.c.l.b16 %v285
      %v373 = vunpack.c.l.b16 %v286
      %v374 = vunpack.c.l.b16 %v287
      %v375 = vunpack.c.l.b16 %v288
      %v376 = vunpack.c.l.b16 %v289
      %v377 = vunpack.c.l.b16 %v290
      %v378 = vunpack.c.l.b16 %v291
      %v379 = vunpack.c.l.b16 %v292
      %v380 = vunpack.c.l.b16 %v293
      %v381 = vunpack.c.l.b16 %v294
      %v382 = vunpack.c.l.b16 %v295
      %v383 = vunpack.c.l.b16 %v296
      %v384 = vunpack.c.l.b16 %v297
      %v385 = vunpack.c.l.b16 %v298
      %v386 = vunpack.c.l.b16 %v299
      %v387 = vunpack.c.l.b16 %v300
      %v388 = vunpack.c.l.b16 %v301
      %v389 = vunpack.c.l.b16 %v302
      %v390 = vunpack.c.l.b16 %v303
      %v391 = vunpack.c.l.b16 %v304
      %v392 = vunpack.c.l.b16 %v305
      %v393 = vunpack.c.l.b16 %v306
      %v394 = vunpack.c.l.b16 %v307
      %v395 = vunpack.c.l.b16 %v308
      %v396 = vpack.c.b16 %v361, %v360
      %v397 = vpack.c.b16 %v363, %v362
      %v398 = vpack.c.b16 %v365, %v364
      %v399 = vpack.c.b16 %v367, %v366
      %v400 = vpack.c.b16 %v369, %v368
      %v401 = vpack.c.b16 %v371, %v370
      %v402 = vpack.c.b16 %v373, %v372
      %v403 = vpack.c.b16 %v375, %v374
      %v404 = vpack.c.b16 %v377, %v376
      %v405 = vpack.c.b16 %v379, %v378
      %v406 = vpack.c.b16 %v381, %v380
      %v407 = vpack.c.b16 %v383, %v382
      %v408 = vpack.c.b16 %v385, %v384
      %v409 = vpack.c.b16 %v387, %v386
      %v410 = vpack.c.b16 %v389, %v388
      %v411 = vpack.c.b16 %v391, %v390
      %v412 = vpack.c.b16 %v393, %v392
      %v413 = vpack.c.b16 %v395, %v394
      %vm432 = vcmask 261120
      %v434 = vsel %vm432, %v321, 0
      %436 = vmatprep.subr.bf16.mxu0 0
      %437 = vmatpush1.bf16.msra.mxu0 %v396
      %438 = vmatprep.subr.bf16.mxu0 0
      %439 = vmatpush1.bf16.msra.mxu0 %v397
      %440 = vmatprep.subr.bf16.mxu0 0
      %441 = vmatpush1.bf16.msra.mxu0 %v398
      %442 = vmatprep.subr.bf16.mxu0 0
      %443 = vmatpush1.bf16.msra.mxu0 %v399
      %444 = vmatprep.subr.bf16.mxu0 0
      %445 = vmatpush1.bf16.msra.mxu0 %v400
      %446 = vmatprep.subr.bf16.mxu0 0
      %447 = vmatpush1.bf16.msra.mxu0 %v401
      %448 = vmatprep.subr.bf16.mxu0 0
      %449 = vmatpush1.bf16.msra.mxu0 %v402
      %450 = vmatprep.subr.bf16.mxu0 0
      %451 = vmatpush1.bf16.msra.mxu0 %v403
      %452 = vmatprep.subr.bf16.mxu0 0
      %453 = vmatpush1.bf16.msra.mxu0 %v404
      %454 = vmatprep.subr.bf16.mxu0 0
      %455 = vmatpush1.bf16.msra.mxu0 %v405
      %456 = vmatprep.subr.bf16.mxu0 0
      %457 = vmatpush1.bf16.msra.mxu0 %v406
      %458 = vmatprep.subr.bf16.mxu0 0
      %459 = vmatpush1.bf16.msra.mxu0 %v407
      %460 = vmatprep.subr.bf16.mxu0 0
      %461 = vmatpush1.bf16.msra.mxu0 %v408
      %462 = vmatprep.subr.bf16.mxu0 0
      %463 = vmatpush1.bf16.msra.mxu0 %v409
      %464 = vmatprep.subr.bf16.mxu0 0
      %465 = vmatpush1.bf16.msra.mxu0 %v410
      %466 = vmatprep.subr.bf16.mxu0 0
      %467 = vmatpush1.bf16.msra.mxu0 %v411
      %468 = vmatprep.mubr.bf16.mxu0 %v320
      %469 = vmatmul.mubr.bf16.gmra.mrb[0].mxu0 %v319
      %v470 = vpop.f32.mrb[0].mxu0
      %v471 = vadd.f32 0.0, %v470
      %v472 = vpop.f32.mrb[0].mxu0
      %v473 = vpop.f32.mrb[0].mxu0
      %v474 = vadd.f32 0.0, %v473
      %v475 = vpop.f32.mrb[0].mxu0
      %476 = vdwg.mxu0
      %477 = vmatprep.subr.bf16.mxu0 0
      %478 = vmatpush1.bf16.msra.mxu0 %v412
      %479 = vmatprep.subr.bf16.mxu0 0
      %480 = vmatpush1.bf16.msra.mxu0 %v413
      %481 = vmatprep.subr.bf16.mxu0 0
      %482 = vmatpush1.bf16.msra.mxu0 0
      %483 = vmatprep.subr.bf16.mxu0 0
      %484 = vmatpush1.bf16.msra.mxu0 0
      %485 = vmatprep.subr.bf16.mxu0 0
      %486 = vmatpush1.bf16.msra.mxu0 0
      %487 = vmatprep.subr.bf16.mxu0 0
      %488 = vmatpush1.bf16.msra.mxu0 0
      %489 = vmatprep.subr.bf16.mxu0 0
      %490 = vmatpush1.bf16.msra.mxu0 0
      %491 = vmatprep.subr.bf16.mxu0 0
      %492 = vmatpush1.bf16.msra.mxu0 0
      %493 = vmatprep.subr.bf16.mxu0 0
      %494 = vmatpush1.bf16.msra.mxu0 0
      %495 = vmatprep.subr.bf16.mxu0 0
      %496 = vmatpush1.bf16.msra.mxu0 0
      %497 = vmatprep.subr.bf16.mxu0 0
      %498 = vmatpush1.bf16.msra.mxu0 0
      %499 = vmatprep.subr.bf16.mxu0 0
      %500 = vmatpush1.bf16.msra.mxu0 0
      %501 = vmatprep.subr.bf16.mxu0 0
      %502 = vmatpush1.bf16.msra.mxu0 0
      %503 = vmatprep.subr.bf16.mxu0 0
      %504 = vmatpush1.bf16.msra.mxu0 0
      %505 = vmatprep.subr.bf16.mxu0 0
      %506 = vmatpush1.bf16.msra.mxu0 0
      %507 = vmatprep.subr.bf16.mxu0 0
      %508 = vmatpush1.bf16.msra.mxu0 0
      %509 = vmatprep.mubr.bf16.mxu0 0
      %510 = vmatmul.mubr.bf16.gmra.mrb[0].mxu0 %v434
      %v511 = vpop.f32.mrb[0].mxu0
      %v512 = vadd.f32 %v471, %v511
      %v513 = vpop.f32.mrb[0].mxu0
      %v514 = vpop.f32.mrb[0].mxu0
      %v515 = vadd.f32 %v474, %v514
      %v516 = vpop.f32.mrb[0].mxu0
      %517 = vdwg.mxu0
      %v518 = vpack.c.bf16 %v515, %v512
      %v520 = vunpack.c.l.b16 %v518
      %v521 = vunpack.c.h.b16 %v518
      %v522 = vpack.c.b16 %v520, %v520
      %v523 = vpack.c.b16 %v521, %v521
      %526 = vst [vmem:[%s254] sm:$0xf] %v522
      %527 = vst [vmem:[%s254 + $0x4] sm:$0xf] %v523
      %p528 = scmp.eq.s32.totalorder %s21, 0
      // Predicated region
      $region29: #{basic_block_forward.7} parent=27 // pred_check
        %p529 = pneg %p528
      $region30: #{basic_block_forward.7} parent=27 // pred_check_branch
        %531 = sbr.rel (%p529) target = $region32
      $region31: #{basic_block_forward.7} parent=27 // pred_region
        %vm532 = vcmask 7168
        %533 = vst.msk [vmem:[%s260] sm:$0xff] %vm532, 0.0
        %534 = vst.msk [vmem:[%s260 + $0x8] sm:$0xff] %vm532, 0.0
        %535 = vst.msk [vmem:[%s266] sm:$0xff] %vm532, 0.0
        %536 = vst.msk [vmem:[%s266 + $0x8] sm:$0xff] %vm532, 0.0
      $region32: #{basic_block_forward.7} parent=27 // pred_fallthru
        _
      %v537 = vld [vmem:[%s260] sm:$0xff]
      %v538 = vld [vmem:[%s260 + $0x8] sm:$0xff]
      %539 = vadd.xlane.f32.xlu0 %v512
      %v540 = vpop.xlane.xlu0 %539
      %541 = vadd.xlane.f32.xlu0 %v515
      %v542 = vpop.xlane.xlu0 %541
      %v543 = vadd.f32 %v537, %v540
      %v544 = vadd.f32 %v538, %v542
      %vm545 = vcmask 7168
      %546 = vst.msk [vmem:[%s260] sm:$0xff] %vm545, %v543
      %547 = vst.msk [vmem:[%s260 + $0x8] sm:$0xff] %vm545, %v544
      %v548 = vld [vmem:[%s266] sm:$0xff]
      %v549 = vld [vmem:[%s266 + $0x8] sm:$0xff]
      %v550 = vmul.f32 %v512, %v512
      %v551 = vmul.f32 %v515, %v515
      %552 = vadd.xlane.f32.xlu0 %v550
      %v553 = vpop.xlane.xlu0 %552
      %554 = vadd.xlane.f32.xlu0 %v551
      %v555 = vpop.xlane.xlu0 %554
      %v556 = vadd.f32 %v548, %v553
      %v557 = vadd.f32 %v549, %v555
      %558 = vst.msk [vmem:[%s266] sm:$0xff] %vm545, %v556
      %559 = vst.msk [vmem:[%s266 + $0x8] sm:$0xff] %vm545, %v557
      %s560 = smul.u32 2, %s20
      %p561 = scmp.lt.s32.totalorder %s560, 3
      %s562 = scalar_select %p561, %s560, 3
      %p563 = scmp.lt.s32.totalorder %s21, 0
      %s564 = scalar_select %p563, %s21, 0
      %s565 = sadd.s32 %s564, %s562
      %s566 = smul.addr %s565, 4
      %s567 = scalar_lea.vmem %s2, %s566
      %s568 = smul.u32 2, %s20
      %p569 = scmp.lt.s32.totalorder %s568, 3
      %s570 = scalar_select %p569, %s568, 3
      %s571 = smul.addr %s570, 8
      %s572 = scalar_lea.vmem %s3, %s571
      %s573 = smul.u32 2, %s20
      %p574 = scmp.lt.s32.totalorder %s573, 3
      %s575 = scalar_select %p574, %s573, 3
      %s576 = smul.addr %s575, 8
      %s577 = scalar_lea.vmem %s4, %s576
      // Predicated region
      $region33: #{basic_block_forward.7} parent=27 // pred_check
        %p578 = pneg %p100
      $region34: #{basic_block_forward.7} parent=27 // pred_check_branch
        %580 = sbr.rel (%p578) target = $region36
      $region35: #{basic_block_forward.7} parent=27 // pred_region
        %s581 = smul.u32 2, %s20
      $region36: #{basic_block_forward.7} parent=27 // pred_fallthru
        _
      // Predicated region
      $region37: #{basic_block_forward.7} parent=27 // pred_check
        %p582 = pneg %p126
      $region38: #{basic_block_forward.7} parent=27 // pred_check_branch
        %584 = sbr.rel (%p582) target = $region40
      $region39: #{basic_block_forward.7} parent=27 // pred_region
        %s585 = smul.u32 2, %s20
      $region40: #{basic_block_forward.7} parent=27 // pred_fallthru
        _
      // Predicated region
      $region41: #{basic_block_forward.7} parent=27 // pred_check
        %p586 = pneg %p152
      $region42: #{basic_block_forward.7} parent=27 // pred_check_branch
        %588 = sbr.rel (%p586) target = $region44
      $region43: #{basic_block_forward.7} parent=27 // pred_region
        %s589 = smul.u32 2, %s20
      $region44: #{basic_block_forward.7} parent=27 // pred_fallthru
        _
    $region28: #{basic_block_forward.7} parent=5 // pred_fallthru
      _
    %p590 = scmp.le.s32.totalorder 2, %s11
    // Predicated region
    $region45: #{basic_block_forward.7} parent=5 // pred_check
      %p591 = pneg %p590
    $region46: #{basic_block_forward.7} parent=5 // pred_check_branch
      %593 = sbr.rel (%p591) target = $region48
    $region47: #{basic_block_forward.7} parent=5 // pred_region
      %s594 = ssub.s32 %s11, 2
      // Predicated region
      $region49: #{basic_block_forward.7} parent=47 // pred_check
        %p595 = pneg %p106
      $region50: #{basic_block_forward.7} parent=47 // pred_check_branch
        %597 = sbr.rel (%p595) target = $region52
      $region51: #{basic_block_forward.7} parent=47 // pred_region
        %s598 = smul.u32 2, %s22
        %p599 = scmp.lt.s32.totalorder %s598, 3
        %s600 = scalar_select %p599, %s598, 3
        %p601 = scmp.lt.s32.totalorder %s23, 0
        %s602 = scalar_select %p601, %s23, 0
        %s603 = sadd.s32 %s602, %s600
        %s604 = smul.addr %s603, 4
        %s605 = scalar_lea.vmem %s2, %s604
      $region52: #{basic_block_forward.7} parent=47 // pred_fallthru
        _
      // Predicated region
      $region53: #{basic_block_forward.7} parent=47 // pred_check
        %p606 = pneg %p132
      $region54: #{basic_block_forward.7} parent=47 // pred_check_branch
        %608 = sbr.rel (%p606) target = $region56
      $region55: #{basic_block_forward.7} parent=47 // pred_region
        %s609 = smul.u32 2, %s22
        %p610 = scmp.lt.s32.totalorder %s609, 3
        %s611 = scalar_select %p610, %s609, 3
        %s612 = smul.addr %s611, 8
        %s613 = scalar_lea.vmem %s3, %s612
      $region56: #{basic_block_forward.7} parent=47 // pred_fallthru
        _
      // Predicated region
      $region57: #{basic_block_forward.7} parent=47 // pred_check
        %p614 = pneg %p158
      $region58: #{basic_block_forward.7} parent=47 // pred_check_branch
        %616 = sbr.rel (%p614) target = $region60
      $region59: #{basic_block_forward.7} parent=47 // pred_region
        %s617 = smul.u32 2, %s22
        %p618 = scmp.lt.s32.totalorder %s617, 3
        %s619 = scalar_select %p618, %s617, 3
        %s620 = smul.addr %s619, 8
        %s621 = scalar_lea.vmem %s4, %s620
      $region60: #{basic_block_forward.7} parent=47 // pred_fallthru
        _
    $region48: #{basic_block_forward.7} parent=5 // pred_fallthru
      _
  $region6: #{basic_block_forward.7} parent=0 // loop_footer
    %s15 = sadd.s32 1, %s11
  $region7: #{basic_block_forward.7} parent=0 // loop_footer_branch
    %10 = sbr.rel target = $region3
  $region8: #{basic_block_forward.7} parent=0 // loop_exit
    _

</llo_original>
